<compile_context>
chip_gen: v5e
topology: v5e:2x2
jax: 0.10.0
libtpu: 0.0.40
codegen_flags: <defaults>
</compile_context>

<pallas_src>
import functools
import math

import jax
import jax.numpy as jnp
from jax import lax
from jax.experimental import pallas as pl
from jax.experimental.pallas import tpu as pltpu

KSIZE = 7
PAD = (KSIZE - 1) // 2   # 3
CHUNK = 8                # sublane-full channel chunk for the bulk streaming


def _spatial_gate_kernel(width, w_ref, sb_ref, cmask_ref, x_ref, o_ref, fp_ref):
    """Fused ChannelPool + 7x7 conv + BN + sigmoid + gating for one batch tile.

    width     : static spatial W (x/o arrive spatially flattened to H*W lanes)
    w_ref     : SMEM (2*7*7,) f32  conv weight, flattened [cin, kh, kw]
    sb_ref    : SMEM (2,)     f32  folded BatchNorm (scale, bias)
    cmask_ref : VMEM (7, H*W) f32  column-validity mask per horizontal offset
    x_ref     : VMEM (b_tile, C, H*W)  lane-dense bulk input
    o_ref     : VMEM (b_tile, C, H*W)  lane-dense bulk output
    fp_ref    : VMEM (2, 1, H*W + 2*margin) f32 zero-margined flat pooled maps
    """
    b_tile, num_c, hw = x_ref.shape
    margin = PAD * (width + 1)          # covers the most negative tap offset
    out_dtype = o_ref.dtype

    # ---- hoist the 98 conv weights + folded-BN scalars out of SMEM once ----
    wts = [[[w_ref[(ci * KSIZE + ky) * KSIZE + kx] for kx in range(KSIZE)]
            for ky in range(KSIZE)] for ci in range(2)]
    scale = sb_ref[0]
    bias = sb_ref[1]
    inv_c = 1.0 / num_c

    # Margins must stay zero; the interior is overwritten per batch element.
    # Re-zero every grid step (tiny) rather than gating on program_id == 0 so
    # the kernel stays correct when the parallel axis is split across cores.
    fp_ref[...] = jnp.zeros_like(fp_ref)

    n_full = num_c // CHUNK
    rem = num_c - n_full * CHUNK

    @pl.loop(0, b_tile)
    def _per_batch(b):
        xb = x_ref.at[b]       # (num_c, hw) ref views -- bulk data is streamed
        ob = o_ref.at[b]       # in chunks, never held as one long-lived value

        # -------- ChannelPool: running max / sum over 8-channel chunks ------
        mx = None
        sm = None
        if n_full > 0:
            first = xb[pl.ds(0, CHUNK), :].astype(jnp.float32)
            if n_full > 1:
                def pool_body(i, carry):
                    m8, s8 = carry
                    start = pl.multiple_of(i * CHUNK, CHUNK)
                    blk = xb[pl.ds(start, CHUNK), :].astype(jnp.float32)
                    return jnp.maximum(m8, blk), s8 + blk
                m8, s8 = lax.fori_loop(1, n_full, pool_body, (first, first))
            else:
                m8, s8 = first, first
            mx = jnp.max(m8, axis=0, keepdims=True)           # (1, hw)
            sm = jnp.sum(s8, axis=0, keepdims=True)
        if rem > 0:
            tail = xb[pl.ds(n_full * CHUNK, rem), :].astype(jnp.float32)
            mxt = jnp.max(tail, axis=0, keepdims=True)
            smt = jnp.sum(tail, axis=0, keepdims=True)
            mx = mxt if mx is None else jnp.maximum(mx, mxt)
            sm = smt if sm is None else sm + smt

        # place the two tiny pooled maps into the zero-margined flat scratch
        fp_ref[0, :, pl.ds(margin, hw)] = mx
        fp_ref[1, :, pl.ds(margin, hw)] = sm * inv_c

        # -------- 7x7 / pad-3 conv on the flat layout -----------------------
        # Row offsets are plain address shifts into the margined scratch;
        # horizontal wrap-around is killed by the precomputed column masks
        # (applied once per kx, not per tap).  Two independent accumulators
        # break the serial add chain.
        accs = [None, None]
        for kx in range(KSIZE):
            cm = cmask_ref[pl.ds(kx, 1), :]                   # (1, hw)
            for ci in range(2):
                part = None
                for ky in range(KSIZE):
                    off = margin + (ky - PAD) * width + (kx - PAD)
                    tap = wts[ci][ky][kx] * fp_ref[ci, :, pl.ds(off, hw)]
                    part = tap if part is None else part + tap
                masked = part * cm
                a = (kx + ci) % 2
                accs[a] = masked if accs[a] is None else accs[a] + masked
        conv = accs[0] + accs[1]                              # (1, hw) f32

        # folded BatchNorm + (exact) sigmoid gate
        gate = 1.0 / (1.0 + jnp.exp(-(conv * scale + bias)))  # (1, hw)

        # -------- broadcast gating: lane-dense chunked loads/stores ---------
        if n_full > 0:
            gate_c = jnp.broadcast_to(gate, (CHUNK, hw))      # hoisted out of loop

            @pl.loop(0, n_full)
            def _gate_chunk(i):
                start = pl.multiple_of(i * CHUNK, CHUNK)
                blk = xb[pl.ds(start, CHUNK), :].astype(jnp.float32)
                ob[pl.ds(start, CHUNK), :] = (blk * gate_c).astype(out_dtype)
        if rem > 0:
            start = n_full * CHUNK
            blk = xb[pl.ds(start, rem), :].astype(jnp.float32)
            ob[pl.ds(start, rem), :] = (blk * gate).astype(out_dtype)


def _vmem_limit_bytes():
    cap = 64 * 1024 * 1024                       # conservative fallback (v7x-sized)
    try:
        cap = int(getattr(pltpu.get_tpu_info(), "vmem_capacity_bytes", cap))
    except Exception:
        pass
    # ~3/4 of physical, capped at 96 MiB: ~96 MiB on v5e/v6e, ~48 MiB on v7x.
    return int(min(cap * 3 // 4, 96 * 1024 * 1024))


def _pick_batch_tile(n, per_elem_bytes, vmem_limit_bytes):
    # in/out blocks are double-buffered (~4x block bytes resident); keep them
    # under ~half the budget and target ~2 MiB blocks for DMA efficiency.
    by_vmem = max(1, (vmem_limit_bytes // 2) // max(1, 4 * per_elem_bytes))
    by_target = max(1, (2 * 1024 * 1024) // max(1, per_elem_bytes))
    cap = max(1, min(by_vmem, by_target))
    if n >= 2:
        cap = min(cap, n // 2)      # >= 2 grid steps -> both v7x TCs get work
    cap = max(1, min(cap, n))
    for d in range(cap, 0, -1):     # largest divisor of n under the cap
        if n % d == 0:
            return d
    return 1


def spatial_gate_forward(params, x):
    """SpatialGate forward. x: (N, C, H, W) -> (N, C, H, W)."""
    n, c, h, w = x.shape
    hw = h * w

    conv_w = params["conv_w"]                               # (1, 2, 7, 7), no bias
    bn = params["bn"]
    scale = bn["gamma"] / jnp.sqrt(bn["var"] + 1e-5)        # (1,)
    bias = bn["beta"] - bn["mean"] * scale                  # (1,)
    w_flat = conv_w.reshape(-1).astype(jnp.float32)         # (98,)
    sb = jnp.concatenate([scale, bias]).astype(jnp.float32)  # (2,)

    # column-validity masks for the 7 horizontal tap offsets, built on the
    # flat spatial layout so the kernel never reshapes or does integer mod.
    col = jnp.arange(hw, dtype=jnp.int32) % w
    cmask = jnp.stack(
        [((col + (kx - PAD) >= 0) & (col + (kx - PAD) < w)).astype(jnp.float32)
         for kx in range(KSIZE)], axis=0)                   # (7, hw)

    x_flat = x.reshape(n, c, hw)                            # free metadata reshape

    vmem_limit = _vmem_limit_bytes()
    b_tile = _pick_batch_tile(n, c * hw * x.dtype.itemsize, vmem_limit)
    grid = (n // b_tile,)

    margin = PAD * (w + 1)
    length = hw + 2 * margin

    out_flat = pl.pallas_call(
        functools.partial(_spatial_gate_kernel, w),
        out_shape=jax.ShapeDtypeStruct((n, c, hw), x.dtype),
        grid_spec=pltpu.PrefetchScalarGridSpec(
            num_scalar_prefetch=0,
            grid=grid,
            in_specs=[
                pl.BlockSpec(memory_space=pltpu.MemorySpace.SMEM),   # conv weights
                pl.BlockSpec(memory_space=pltpu.MemorySpace.SMEM),   # BN scale/bias
                pl.BlockSpec((KSIZE, hw), lambda i: (0, 0)),         # column masks
                pl.BlockSpec((b_tile, c, hw), lambda i: (i, 0, 0)),  # x (flat)
            ],
            out_specs=pl.BlockSpec((b_tile, c, hw), lambda i: (i, 0, 0)),
            scratch_shapes=[pltpu.VMEM((2, 1, length), jnp.float32)],
        ),
        compiler_params=pltpu.CompilerParams(
            dimension_semantics=("parallel",),
            vmem_limit_bytes=vmem_limit,
        ),
    )(w_flat, sb, cmask, x_flat)

    return out_flat.reshape(n, c, h, w)


def spatial_gate_reference(params, x):
    """Pure-JAX reference (same op order as the PyTorch module)."""
    n, c, h, w = x.shape
    conv_w = params["conv_w"]
    bn = params["bn"]
    scale = bn["gamma"] / jnp.sqrt(bn["var"] + 1e-5)
    bias = bn["beta"] - bn["mean"] * scale
    mx = jnp.max(x, axis=1)
    mn = jnp.mean(x, axis=1)
    pooled = jnp.stack([mx, mn], axis=1)                          # (N, 2, H, W)
    pad = jnp.pad(pooled, ((0, 0), (0, 0), (PAD, PAD), (PAD, PAD)))
    acc = jnp.zeros((n, h, w), jnp.float32)
    for ci in range(2):
        for ky in range(KSIZE):
            for kx in range(KSIZE):
                acc = acc + conv_w[0, ci, ky, kx] * pad[:, ci, ky:ky + h, kx:kx + w]
    y = acc * scale[0] + bias[0]
    gate = 1.0 / (1.0 + jnp.exp(-y))
    return x * gate[:, None, :, :]


if __name__ == "__main__":
    key = jax.random.PRNGKey(0)
    kx_, kw_, kb_ = jax.random.split(key, 3)

    N, C, H, W = 2, 4, 16, 16
    x = jax.random.normal(kx_, (N, C, H, W), jnp.float32)

    fan_in = 2 * KSIZE * KSIZE
    kb1, kb2, kb3, kb4 = jax.random.split(kb_, 4)
    params = {
        "conv_w": jax.random.normal(kw_, (1, 2, KSIZE, KSIZE), jnp.float32)
        / math.sqrt(fan_in),
        "bn": {
            "gamma": 1.0 + 0.1 * jax.random.normal(kb1, (1,), jnp.float32),
            "beta": 0.1 * jax.random.normal(kb2, (1,), jnp.float32),
            "mean": 0.1 * jax.random.normal(kb3, (1,), jnp.float32),
            "var": 1.0 + 0.1 * jnp.abs(jax.random.normal(kb4, (1,), jnp.float32)),
        },
    }

    fwd = jax.jit(spatial_gate_forward)
    out = jax.block_until_ready(fwd(params, x))

    assert out.shape == (N, C, H, W), out.shape
    assert bool(jnp.all(jnp.isfinite(out)))

    ref = spatial_gate_reference(params, x)
    max_err = float(jnp.max(jnp.abs(out - ref)))
    assert bool(jnp.allclose(out, ref, atol=1e-4, rtol=1e-4)), max_err

    print("KERNEL_OK")
</pallas_src>

<mosaic_0001>
module attributes {stable_mosaic.version = 11 : i64} {
  func.func @_spatial_gate_kernel(%arg0: i32, %arg1: memref<98xf32, #tpu.memory_space<smem>>, %arg2: memref<2xf32, #tpu.memory_space<smem>>, %arg3: memref<7x256xf32, #tpu.memory_space<vmem>>, %arg4: memref<1x4x256xf32, #tpu.memory_space<vmem>>, %arg5: memref<1x4x256xf32, #tpu.memory_space<vmem>>, %arg6: memref<2x1x358xf32, #tpu.memory_space<vmem>>) attributes {dimension_semantics = [#tpu.dimension_semantics<parallel>], iteration_bounds = array<i64: 2>, scalar_prefetch = 0 : i64, scratch_operands = 1 : i64, tpu.core_type = #tpu.core_type<tc>, window_params = [{transform_indices = @transform_0, window_bounds = array<i64: 98>}, {transform_indices = @transform_1, window_bounds = array<i64: 2>}, {pipeline_mode = #tpu.pipeline_mode<synchronous>, transform_indices = @transform_2, window_bounds = array<i64: 7, 256>}, {transform_indices = @transform_3, window_bounds = array<i64: 1, 4, 256>}, {transform_indices = @transform_4, window_bounds = array<i64: 1, 4, 256>}]} {
    %c0 = arith.constant 0 : index
    %0 = memref.load %arg1[%c0] : memref<98xf32, #tpu.memory_space<smem>>
    %c1 = arith.constant 1 : index
    %1 = memref.load %arg1[%c1] : memref<98xf32, #tpu.memory_space<smem>>
    %c2 = arith.constant 2 : index
    %2 = memref.load %arg1[%c2] : memref<98xf32, #tpu.memory_space<smem>>
    %c3 = arith.constant 3 : index
    %3 = memref.load %arg1[%c3] : memref<98xf32, #tpu.memory_space<smem>>
    %c4 = arith.constant 4 : index
    %4 = memref.load %arg1[%c4] : memref<98xf32, #tpu.memory_space<smem>>
    %c5 = arith.constant 5 : index
    %5 = memref.load %arg1[%c5] : memref<98xf32, #tpu.memory_space<smem>>
    %c6 = arith.constant 6 : index
    %6 = memref.load %arg1[%c6] : memref<98xf32, #tpu.memory_space<smem>>
    %c7 = arith.constant 7 : index
    %7 = memref.load %arg1[%c7] : memref<98xf32, #tpu.memory_space<smem>>
    %c8 = arith.constant 8 : index
    %8 = memref.load %arg1[%c8] : memref<98xf32, #tpu.memory_space<smem>>
    %c9 = arith.constant 9 : index
    %9 = memref.load %arg1[%c9] : memref<98xf32, #tpu.memory_space<smem>>
    %c10 = arith.constant 10 : index
    %10 = memref.load %arg1[%c10] : memref<98xf32, #tpu.memory_space<smem>>
    %c11 = arith.constant 11 : index
    %11 = memref.load %arg1[%c11] : memref<98xf32, #tpu.memory_space<smem>>
    %c12 = arith.constant 12 : index
    %12 = memref.load %arg1[%c12] : memref<98xf32, #tpu.memory_space<smem>>
    %c13 = arith.constant 13 : index
    %13 = memref.load %arg1[%c13] : memref<98xf32, #tpu.memory_space<smem>>
    %c14 = arith.constant 14 : index
    %14 = memref.load %arg1[%c14] : memref<98xf32, #tpu.memory_space<smem>>
    %c15 = arith.constant 15 : index
    %15 = memref.load %arg1[%c15] : memref<98xf32, #tpu.memory_space<smem>>
    %c16 = arith.constant 16 : index
    %16 = memref.load %arg1[%c16] : memref<98xf32, #tpu.memory_space<smem>>
    %c17 = arith.constant 17 : index
    %17 = memref.load %arg1[%c17] : memref<98xf32, #tpu.memory_space<smem>>
    %c18 = arith.constant 18 : index
    %18 = memref.load %arg1[%c18] : memref<98xf32, #tpu.memory_space<smem>>
    %c19 = arith.constant 19 : index
    %19 = memref.load %arg1[%c19] : memref<98xf32, #tpu.memory_space<smem>>
    %c20 = arith.constant 20 : index
    %20 = memref.load %arg1[%c20] : memref<98xf32, #tpu.memory_space<smem>>
    %c21 = arith.constant 21 : index
    %21 = memref.load %arg1[%c21] : memref<98xf32, #tpu.memory_space<smem>>
    %c22 = arith.constant 22 : index
    %22 = memref.load %arg1[%c22] : memref<98xf32, #tpu.memory_space<smem>>
    %c23 = arith.constant 23 : index
    %23 = memref.load %arg1[%c23] : memref<98xf32, #tpu.memory_space<smem>>
    %c24 = arith.constant 24 : index
    %24 = memref.load %arg1[%c24] : memref<98xf32, #tpu.memory_space<smem>>
    %c25 = arith.constant 25 : index
    %25 = memref.load %arg1[%c25] : memref<98xf32, #tpu.memory_space<smem>>
    %c26 = arith.constant 26 : index
    %26 = memref.load %arg1[%c26] : memref<98xf32, #tpu.memory_space<smem>>
    %c27 = arith.constant 27 : index
    %27 = memref.load %arg1[%c27] : memref<98xf32, #tpu.memory_space<smem>>
    %c28 = arith.constant 28 : index
    %28 = memref.load %arg1[%c28] : memref<98xf32, #tpu.memory_space<smem>>
    %c29 = arith.constant 29 : index
    %29 = memref.load %arg1[%c29] : memref<98xf32, #tpu.memory_space<smem>>
    %c30 = arith.constant 30 : index
    %30 = memref.load %arg1[%c30] : memref<98xf32, #tpu.memory_space<smem>>
    %c31 = arith.constant 31 : index
    %31 = memref.load %arg1[%c31] : memref<98xf32, #tpu.memory_space<smem>>
    %c32 = arith.constant 32 : index
    %32 = memref.load %arg1[%c32] : memref<98xf32, #tpu.memory_space<smem>>
    %c33 = arith.constant 33 : index
    %33 = memref.load %arg1[%c33] : memref<98xf32, #tpu.memory_space<smem>>
    %c34 = arith.constant 34 : index
    %34 = memref.load %arg1[%c34] : memref<98xf32, #tpu.memory_space<smem>>
    %c35 = arith.constant 35 : index
    %35 = memref.load %arg1[%c35] : memref<98xf32, #tpu.memory_space<smem>>
    %c36 = arith.constant 36 : index
    %36 = memref.load %arg1[%c36] : memref<98xf32, #tpu.memory_space<smem>>
    %c37 = arith.constant 37 : index
    %37 = memref.load %arg1[%c37] : memref<98xf32, #tpu.memory_space<smem>>
    %c38 = arith.constant 38 : index
    %38 = memref.load %arg1[%c38] : memref<98xf32, #tpu.memory_space<smem>>
    %c39 = arith.constant 39 : index
    %39 = memref.load %arg1[%c39] : memref<98xf32, #tpu.memory_space<smem>>
    %c40 = arith.constant 40 : index
    %40 = memref.load %arg1[%c40] : memref<98xf32, #tpu.memory_space<smem>>
    %c41 = arith.constant 41 : index
    %41 = memref.load %arg1[%c41] : memref<98xf32, #tpu.memory_space<smem>>
    %c42 = arith.constant 42 : index
    %42 = memref.load %arg1[%c42] : memref<98xf32, #tpu.memory_space<smem>>
    %c43 = arith.constant 43 : index
    %43 = memref.load %arg1[%c43] : memref<98xf32, #tpu.memory_space<smem>>
    %c44 = arith.constant 44 : index
    %44 = memref.load %arg1[%c44] : memref<98xf32, #tpu.memory_space<smem>>
    %c45 = arith.constant 45 : index
    %45 = memref.load %arg1[%c45] : memref<98xf32, #tpu.memory_space<smem>>
    %c46 = arith.constant 46 : index
    %46 = memref.load %arg1[%c46] : memref<98xf32, #tpu.memory_space<smem>>
    %c47 = arith.constant 47 : index
    %47 = memref.load %arg1[%c47] : memref<98xf32, #tpu.memory_space<smem>>
    %c48 = arith.constant 48 : index
    %48 = memref.load %arg1[%c48] : memref<98xf32, #tpu.memory_space<smem>>
    %c49 = arith.constant 49 : index
    %49 = memref.load %arg1[%c49] : memref<98xf32, #tpu.memory_space<smem>>
    %c50 = arith.constant 50 : index
    %50 = memref.load %arg1[%c50] : memref<98xf32, #tpu.memory_space<smem>>
    %c51 = arith.constant 51 : index
    %51 = memref.load %arg1[%c51] : memref<98xf32, #tpu.memory_space<smem>>
    %c52 = arith.constant 52 : index
    %52 = memref.load %arg1[%c52] : memref<98xf32, #tpu.memory_space<smem>>
    %c53 = arith.constant 53 : index
    %53 = memref.load %arg1[%c53] : memref<98xf32, #tpu.memory_space<smem>>
    %c54 = arith.constant 54 : index
    %54 = memref.load %arg1[%c54] : memref<98xf32, #tpu.memory_space<smem>>
    %c55 = arith.constant 55 : index
    %55 = memref.load %arg1[%c55] : memref<98xf32, #tpu.memory_space<smem>>
    %c56 = arith.constant 56 : index
    %56 = memref.load %arg1[%c56] : memref<98xf32, #tpu.memory_space<smem>>
    %c57 = arith.constant 57 : index
    %57 = memref.load %arg1[%c57] : memref<98xf32, #tpu.memory_space<smem>>
    %c58 = arith.constant 58 : index
    %58 = memref.load %arg1[%c58] : memref<98xf32, #tpu.memory_space<smem>>
    %c59 = arith.constant 59 : index
    %59 = memref.load %arg1[%c59] : memref<98xf32, #tpu.memory_space<smem>>
    %c60 = arith.constant 60 : index
    %60 = memref.load %arg1[%c60] : memref<98xf32, #tpu.memory_space<smem>>
    %c61 = arith.constant 61 : index
    %61 = memref.load %arg1[%c61] : memref<98xf32, #tpu.memory_space<smem>>
    %c62 = arith.constant 62 : index
    %62 = memref.load %arg1[%c62] : memref<98xf32, #tpu.memory_space<smem>>
    %c63 = arith.constant 63 : index
    %63 = memref.load %arg1[%c63] : memref<98xf32, #tpu.memory_space<smem>>
    %c64 = arith.constant 64 : index
    %64 = memref.load %arg1[%c64] : memref<98xf32, #tpu.memory_space<smem>>
    %c65 = arith.constant 65 : index
    %65 = memref.load %arg1[%c65] : memref<98xf32, #tpu.memory_space<smem>>
    %c66 = arith.constant 66 : index
    %66 = memref.load %arg1[%c66] : memref<98xf32, #tpu.memory_space<smem>>
    %c67 = arith.constant 67 : index
    %67 = memref.load %arg1[%c67] : memref<98xf32, #tpu.memory_space<smem>>
    %c68 = arith.constant 68 : index
    %68 = memref.load %arg1[%c68] : memref<98xf32, #tpu.memory_space<smem>>
    %c69 = arith.constant 69 : index
    %69 = memref.load %arg1[%c69] : memref<98xf32, #tpu.memory_space<smem>>
    %c70 = arith.constant 70 : index
    %70 = memref.load %arg1[%c70] : memref<98xf32, #tpu.memory_space<smem>>
    %c71 = arith.constant 71 : index
    %71 = memref.load %arg1[%c71] : memref<98xf32, #tpu.memory_space<smem>>
    %c72 = arith.constant 72 : index
    %72 = memref.load %arg1[%c72] : memref<98xf32, #tpu.memory_space<smem>>
    %c73 = arith.constant 73 : index
    %73 = memref.load %arg1[%c73] : memref<98xf32, #tpu.memory_space<smem>>
    %c74 = arith.constant 74 : index
    %74 = memref.load %arg1[%c74] : memref<98xf32, #tpu.memory_space<smem>>
    %c75 = arith.constant 75 : index
    %75 = memref.load %arg1[%c75] : memref<98xf32, #tpu.memory_space<smem>>
    %c76 = arith.constant 76 : index
    %76 = memref.load %arg1[%c76] : memref<98xf32, #tpu.memory_space<smem>>
    %c77 = arith.constant 77 : index
    %77 = memref.load %arg1[%c77] : memref<98xf32, #tpu.memory_space<smem>>
    %c78 = arith.constant 78 : index
    %78 = memref.load %arg1[%c78] : memref<98xf32, #tpu.memory_space<smem>>
    %c79 = arith.constant 79 : index
    %79 = memref.load %arg1[%c79] : memref<98xf32, #tpu.memory_space<smem>>
    %c80 = arith.constant 80 : index
    %80 = memref.load %arg1[%c80] : memref<98xf32, #tpu.memory_space<smem>>
    %c81 = arith.constant 81 : index
    %81 = memref.load %arg1[%c81] : memref<98xf32, #tpu.memory_space<smem>>
    %c82 = arith.constant 82 : index
    %82 = memref.load %arg1[%c82] : memref<98xf32, #tpu.memory_space<smem>>
    %c83 = arith.constant 83 : index
    %83 = memref.load %arg1[%c83] : memref<98xf32, #tpu.memory_space<smem>>
    %c84 = arith.constant 84 : index
    %84 = memref.load %arg1[%c84] : memref<98xf32, #tpu.memory_space<smem>>
    %c85 = arith.constant 85 : index
    %85 = memref.load %arg1[%c85] : memref<98xf32, #tpu.memory_space<smem>>
    %c86 = arith.constant 86 : index
    %86 = memref.load %arg1[%c86] : memref<98xf32, #tpu.memory_space<smem>>
    %c87 = arith.constant 87 : index
    %87 = memref.load %arg1[%c87] : memref<98xf32, #tpu.memory_space<smem>>
    %c88 = arith.constant 88 : index
    %88 = memref.load %arg1[%c88] : memref<98xf32, #tpu.memory_space<smem>>
    %c89 = arith.constant 89 : index
    %89 = memref.load %arg1[%c89] : memref<98xf32, #tpu.memory_space<smem>>
    %c90 = arith.constant 90 : index
    %90 = memref.load %arg1[%c90] : memref<98xf32, #tpu.memory_space<smem>>
    %c91 = arith.constant 91 : index
    %91 = memref.load %arg1[%c91] : memref<98xf32, #tpu.memory_space<smem>>
    %c92 = arith.constant 92 : index
    %92 = memref.load %arg1[%c92] : memref<98xf32, #tpu.memory_space<smem>>
    %c93 = arith.constant 93 : index
    %93 = memref.load %arg1[%c93] : memref<98xf32, #tpu.memory_space<smem>>
    %c94 = arith.constant 94 : index
    %94 = memref.load %arg1[%c94] : memref<98xf32, #tpu.memory_space<smem>>
    %c95 = arith.constant 95 : index
    %95 = memref.load %arg1[%c95] : memref<98xf32, #tpu.memory_space<smem>>
    %c96 = arith.constant 96 : index
    %96 = memref.load %arg1[%c96] : memref<98xf32, #tpu.memory_space<smem>>
    %c97 = arith.constant 97 : index
    %97 = memref.load %arg1[%c97] : memref<98xf32, #tpu.memory_space<smem>>
    %c0_0 = arith.constant 0 : index
    %98 = memref.load %arg2[%c0_0] : memref<2xf32, #tpu.memory_space<smem>>
    %c1_1 = arith.constant 1 : index
    %99 = memref.load %arg2[%c1_1] : memref<2xf32, #tpu.memory_space<smem>>
    %cst = arith.constant 0.000000e+00 : f32
    %100 = vector.broadcast %cst : f32 to vector<2x1x358xf32>
    %c0_2 = arith.constant 0 : index
    %c0_3 = arith.constant 0 : index
    %c0_4 = arith.constant 0 : index
    %101 = vector.load %arg6[%c0_2, %c0_3, %c0_4] : memref<2x1x358xf32, #tpu.memory_space<vmem>>, vector<2x1x358xf32>
    tpu.vector_store %arg6[%c0_2, %c0_3, %c0_4], %100 {strides = array<i32>} : memref<2x1x358xf32, #tpu.memory_space<vmem>>, vector<2x1x358xf32>,
    %c0_i32 = arith.constant 0 : i32
    %c1_i32 = arith.constant 1 : i32
    %102 = arith.muli %c0_i32, %c1_i32 : i32
    %c0_i32_5 = arith.constant 0 : i32
    %103 = arith.addi %c0_i32_5, %102 : i32
    %c0_i32_6 = arith.constant 0 : i32
    %c0_i32_7 = arith.constant 0 : i32
    %104 = tpu.memref_slice %arg4[%103, %c0_i32_6, %c0_i32_7] : memref<1x4x256xf32, #tpu.memory_space<vmem>> -> memref<1x4x256xf32, #tpu.memory_space<vmem>>
    %105 = tpu.memref_squeeze %104 : memref<1x4x256xf32, #tpu.memory_space<vmem>> -> memref<4x256xf32, #tpu.memory_space<vmem>>
    %c0_8 = arith.constant 0 : index
    %c0_9 = arith.constant 0 : index
    %106 = vector.load %105[%c0_8, %c0_9] : memref<4x256xf32, #tpu.memory_space<vmem>>, vector<4x256xf32>
    %cst_10 = arith.constant dense<0xFF800000> : vector<256xf32>
    %107 = vector.multi_reduction <maximumf>, %106, %cst_10 [0] : vector<4x256xf32> to vector<256xf32>
    %108 = vector.shape_cast %107 : vector<256xf32> to vector<1x256xf32>
    %cst_11 = arith.constant dense<0.000000e+00> : vector<256xf32>
    %109 = vector.multi_reduction <add>, %106, %cst_11 [0] : vector<4x256xf32> to vector<256xf32>
    %110 = vector.shape_cast %109 : vector<256xf32> to vector<1x256xf32>
    %c0_12 = arith.constant 0 : index
    %c0_13 = arith.constant 0 : index
    %c51_14 = arith.constant 51 : index
    %111 = vector.load %arg6[%c0_12, %c0_13, %c51_14] : memref<2x1x358xf32, #tpu.memory_space<vmem>>, vector<1x1x256xf32>
    %112 = vector.shape_cast %111 : vector<1x1x256xf32> to vector<1x256xf32>
    %113 = vector.shape_cast %108 : vector<1x256xf32> to vector<1x1x256xf32>
    tpu.vector_store %arg6[%c0_12, %c0_13, %c51_14], %113 {strides = array<i32>} : memref<2x1x358xf32, #tpu.memory_space<vmem>>, vector<1x1x256xf32>,
    %cst_15 = arith.constant 2.500000e-01 : f32
    %114 = vector.broadcast %cst_15 : f32 to vector<1x256xf32>
    %115 = arith.mulf %110, %114 : vector<1x256xf32>
    %c1_16 = arith.constant 1 : index
    %c0_17 = arith.constant 0 : index
    %c51_18 = arith.constant 51 : index
    %116 = vector.load %arg6[%c1_16, %c0_17, %c51_18] : memref<2x1x358xf32, #tpu.memory_space<vmem>>, vector<1x1x256xf32>
    %117 = vector.shape_cast %116 : vector<1x1x256xf32> to vector<1x256xf32>
    %118 = vector.shape_cast %115 : vector<1x256xf32> to vector<1x1x256xf32>
    tpu.vector_store %arg6[%c1_16, %c0_17, %c51_18], %118 {strides = array<i32>} : memref<2x1x358xf32, #tpu.memory_space<vmem>>, vector<1x1x256xf32>,
    %c0_19 = arith.constant 0 : index
    %c0_20 = arith.constant 0 : index
    %119 = vector.load %arg3[%c0_19, %c0_20] : memref<7x256xf32, #tpu.memory_space<vmem>>, vector<1x256xf32>
    %c0_21 = arith.constant 0 : index
    %c0_22 = arith.constant 0 : index
    %c0_23 = arith.constant 0 : index
    %120 = vector.load %arg6[%c0_21, %c0_22, %c0_23] : memref<2x1x358xf32, #tpu.memory_space<vmem>>, vector<1x1x256xf32>
    %121 = vector.shape_cast %120 : vector<1x1x256xf32> to vector<1x256xf32>
    %122 = vector.broadcast %0 : f32 to vector<1x256xf32>
    %123 = arith.mulf %122, %121 : vector<1x256xf32>
    %c0_24 = arith.constant 0 : index
    %c0_25 = arith.constant 0 : index
    %c16_26 = arith.constant 16 : index
    %124 = vector.load %arg6[%c0_24, %c0_25, %c16_26] : memref<2x1x358xf32, #tpu.memory_space<vmem>>, vector<1x1x256xf32>
    %125 = vector.shape_cast %124 : vector<1x1x256xf32> to vector<1x256xf32>
    %126 = vector.broadcast %7 : f32 to vector<1x256xf32>
    %127 = arith.mulf %126, %125 : vector<1x256xf32>
    %128 = arith.addf %123, %127 : vector<1x256xf32>
    %c0_27 = arith.constant 0 : index
    %c0_28 = arith.constant 0 : index
    %c32_29 = arith.constant 32 : index
    %129 = vector.load %arg6[%c0_27, %c0_28, %c32_29] : memref<2x1x358xf32, #tpu.memory_space<vmem>>, vector<1x1x256xf32>
    %130 = vector.shape_cast %129 : vector<1x1x256xf32> to vector<1x256xf32>
    %131 = vector.broadcast %14 : f32 to vector<1x256xf32>
    %132 = arith.mulf %131, %130 : vector<1x256xf32>
    %133 = arith.addf %128, %132 : vector<1x256xf32>
    %c0_30 = arith.constant 0 : index
    %c0_31 = arith.constant 0 : index
    %c48_32 = arith.constant 48 : index
    %134 = vector.load %arg6[%c0_30, %c0_31, %c48_32] : memref<2x1x358xf32, #tpu.memory_space<vmem>>, vector<1x1x256xf32>
    %135 = vector.shape_cast %134 : vector<1x1x256xf32> to vector<1x256xf32>
    %136 = vector.broadcast %21 : f32 to vector<1x256xf32>
    %137 = arith.mulf %136, %135 : vector<1x256xf32>
    %138 = arith.addf %133, %137 : vector<1x256xf32>
    %c0_33 = arith.constant 0 : index
    %c0_34 = arith.constant 0 : index
    %c64_35 = arith.constant 64 : index
    %139 = vector.load %arg6[%c0_33, %c0_34, %c64_35] : memref<2x1x358xf32, #tpu.memory_space<vmem>>, vector<1x1x256xf32>
    %140 = vector.shape_cast %139 : vector<1x1x256xf32> to vector<1x256xf32>
    %141 = vector.broadcast %28 : f32 to vector<1x256xf32>
    %142 = arith.mulf %141, %140 : vector<1x256xf32>
    %143 = arith.addf %138, %142 : vector<1x256xf32>
    %c0_36 = arith.constant 0 : index
    %c0_37 = arith.constant 0 : index
    %c80_38 = arith.constant 80 : index
    %144 = vector.load %arg6[%c0_36, %c0_37, %c80_38] : memref<2x1x358xf32, #tpu.memory_space<vmem>>, vector<1x1x256xf32>
    %145 = vector.shape_cast %144 : vector<1x1x256xf32> to vector<1x256xf32>
    %146 = vector.broadcast %35 : f32 to vector<1x256xf32>
    %147 = arith.mulf %146, %145 : vector<1x256xf32>
    %148 = arith.addf %143, %147 : vector<1x256xf32>
    %c0_39 = arith.constant 0 : index
    %c0_40 = arith.constant 0 : index
    %c96_41 = arith.constant 96 : index
    %149 = vector.load %arg6[%c0_39, %c0_40, %c96_41] : memref<2x1x358xf32, #tpu.memory_space<vmem>>, vector<1x1x256xf32>
    %150 = vector.shape_cast %149 : vector<1x1x256xf32> to vector<1x256xf32>
    %151 = vector.broadcast %42 : f32 to vector<1x256xf32>
    %152 = arith.mulf %151, %150 : vector<1x256xf32>
    %153 = arith.addf %148, %152 : vector<1x256xf32>
    %154 = arith.mulf %153, %119 : vector<1x256xf32>
    %c1_42 = arith.constant 1 : index
    %c0_43 = arith.constant 0 : index
    %c0_44 = arith.constant 0 : index
    %155 = vector.load %arg6[%c1_42, %c0_43, %c0_44] : memref<2x1x358xf32, #tpu.memory_space<vmem>>, vector<1x1x256xf32>
    %156 = vector.shape_cast %155 : vector<1x1x256xf32> to vector<1x256xf32>
    %157 = vector.broadcast %49 : f32 to vector<1x256xf32>
    %158 = arith.mulf %157, %156 : vector<1x256xf32>
    %c1_45 = arith.constant 1 : index
    %c0_46 = arith.constant 0 : index
    %c16_47 = arith.constant 16 : index
    %159 = vector.load %arg6[%c1_45, %c0_46, %c16_47] : memref<2x1x358xf32, #tpu.memory_space<vmem>>, vector<1x1x256xf32>
    %160 = vector.shape_cast %159 : vector<1x1x256xf32> to vector<1x256xf32>
    %161 = vector.broadcast %56 : f32 to vector<1x256xf32>
    %162 = arith.mulf %161, %160 : vector<1x256xf32>
    %163 = arith.addf %158, %162 : vector<1x256xf32>
    %c1_48 = arith.constant 1 : index
    %c0_49 = arith.constant 0 : index
    %c32_50 = arith.constant 32 : index
    %164 = vector.load %arg6[%c1_48, %c0_49, %c32_50] : memref<2x1x358xf32, #tpu.memory_space<vmem>>, vector<1x1x256xf32>
    %165 = vector.shape_cast %164 : vector<1x1x256xf32> to vector<1x256xf32>
    %166 = vector.broadcast %63 : f32 to vector<1x256xf32>
    %167 = arith.mulf %166, %165 : vector<1x256xf32>
    %168 = arith.addf %163, %167 : vector<1x256xf32>
    %c1_51 = arith.constant 1 : index
    %c0_52 = arith.constant 0 : index
    %c48_53 = arith.constant 48 : index
    %169 = vector.load %arg6[%c1_51, %c0_52, %c48_53] : memref<2x1x358xf32, #tpu.memory_space<vmem>>, vector<1x1x256xf32>
    %170 = vector.shape_cast %169 : vector<1x1x256xf32> to vector<1x256xf32>
    %171 = vector.broadcast %70 : f32 to vector<1x256xf32>
    %172 = arith.mulf %171, %170 : vector<1x256xf32>
    %173 = arith.addf %168, %172 : vector<1x256xf32>
    %c1_54 = arith.constant 1 : index
    %c0_55 = arith.constant 0 : index
    %c64_56 = arith.constant 64 : index
    %174 = vector.load %arg6[%c1_54, %c0_55, %c64_56] : memref<2x1x358xf32, #tpu.memory_space<vmem>>, vector<1x1x256xf32>
    %175 = vector.shape_cast %174 : vector<1x1x256xf32> to vector<1x256xf32>
    %176 = vector.broadcast %77 : f32 to vector<1x256xf32>
    %177 = arith.mulf %176, %175 : vector<1x256xf32>
    %178 = arith.addf %173, %177 : vector<1x256xf32>
    %c1_57 = arith.constant 1 : index
    %c0_58 = arith.constant 0 : index
    %c80_59 = arith.constant 80 : index
    %179 = vector.load %arg6[%c1_57, %c0_58, %c80_59] : memref<2x1x358xf32, #tpu.memory_space<vmem>>, vector<1x1x256xf32>
    %180 = vector.shape_cast %179 : vector<1x1x256xf32> to vector<1x256xf32>
    %181 = vector.broadcast %84 : f32 to vector<1x256xf32>
    %182 = arith.mulf %181, %180 : vector<1x256xf32>
    %183 = arith.addf %178, %182 : vector<1x256xf32>
    %c1_60 = arith.constant 1 : index
    %c0_61 = arith.constant 0 : index
    %c96_62 = arith.constant 96 : index
    %184 = vector.load %arg6[%c1_60, %c0_61, %c96_62] : memref<2x1x358xf32, #tpu.memory_space<vmem>>, vector<1x1x256xf32>
    %185 = vector.shape_cast %184 : vector<1x1x256xf32> to vector<1x256xf32>
    %186 = vector.broadcast %91 : f32 to vector<1x256xf32>
    %187 = arith.mulf %186, %185 : vector<1x256xf32>
    %188 = arith.addf %183, %187 : vector<1x256xf32>
    %189 = arith.mulf %188, %119 : vector<1x256xf32>
    %c1_63 = arith.constant 1 : index
    %c0_64 = arith.constant 0 : index
    %190 = vector.load %arg3[%c1_63, %c0_64] : memref<7x256xf32, #tpu.memory_space<vmem>>, vector<1x256xf32>
    %c0_65 = arith.constant 0 : index
    %c0_66 = arith.constant 0 : index
    %c1_67 = arith.constant 1 : index
    %191 = vector.load %arg6[%c0_65, %c0_66, %c1_67] : memref<2x1x358xf32, #tpu.memory_space<vmem>>, vector<1x1x256xf32>
    %192 = vector.shape_cast %191 : vector<1x1x256xf32> to vector<1x256xf32>
    %193 = vector.broadcast %1 : f32 to vector<1x256xf32>
    %194 = arith.mulf %193, %192 : vector<1x256xf32>
    %c0_68 = arith.constant 0 : index
    %c0_69 = arith.constant 0 : index
    %c17_70 = arith.constant 17 : index
    %195 = vector.load %arg6[%c0_68, %c0_69, %c17_70] : memref<2x1x358xf32, #tpu.memory_space<vmem>>, vector<1x1x256xf32>
    %196 = vector.shape_cast %195 : vector<1x1x256xf32> to vector<1x256xf32>
    %197 = vector.broadcast %8 : f32 to vector<1x256xf32>
    %198 = arith.mulf %197, %196 : vector<1x256xf32>
    %199 = arith.addf %194, %198 : vector<1x256xf32>
    %c0_71 = arith.constant 0 : index
    %c0_72 = arith.constant 0 : index
    %c33_73 = arith.constant 33 : index
    %200 = vector.load %arg6[%c0_71, %c0_72, %c33_73] : memref<2x1x358xf32, #tpu.memory_space<vmem>>, vector<1x1x256xf32>
    %201 = vector.shape_cast %200 : vector<1x1x256xf32> to vector<1x256xf32>
    %202 = vector.broadcast %15 : f32 to vector<1x256xf32>
    %203 = arith.mulf %202, %201 : vector<1x256xf32>
    %204 = arith.addf %199, %203 : vector<1x256xf32>
    %c0_74 = arith.constant 0 : index
    %c0_75 = arith.constant 0 : index
    %c49_76 = arith.constant 49 : index
    %205 = vector.load %arg6[%c0_74, %c0_75, %c49_76] : memref<2x1x358xf32, #tpu.memory_space<vmem>>, vector<1x1x256xf32>
    %206 = vector.shape_cast %205 : vector<1x1x256xf32> to vector<1x256xf32>
    %207 = vector.broadcast %22 : f32 to vector<1x256xf32>
    %208 = arith.mulf %207, %206 : vector<1x256xf32>
    %209 = arith.addf %204, %208 : vector<1x256xf32>
    %c0_77 = arith.constant 0 : index
    %c0_78 = arith.constant 0 : index
    %c65_79 = arith.constant 65 : index
    %210 = vector.load %arg6[%c0_77, %c0_78, %c65_79] : memref<2x1x358xf32, #tpu.memory_space<vmem>>, vector<1x1x256xf32>
    %211 = vector.shape_cast %210 : vector<1x1x256xf32> to vector<1x256xf32>
    %212 = vector.broadcast %29 : f32 to vector<1x256xf32>
    %213 = arith.mulf %212, %211 : vector<1x256xf32>
    %214 = arith.addf %209, %213 : vector<1x256xf32>
    %c0_80 = arith.constant 0 : index
    %c0_81 = arith.constant 0 : index
    %c81_82 = arith.constant 81 : index
    %215 = vector.load %arg6[%c0_80, %c0_81, %c81_82] : memref<2x1x358xf32, #tpu.memory_space<vmem>>, vector<1x1x256xf32>
    %216 = vector.shape_cast %215 : vector<1x1x256xf32> to vector<1x256xf32>
    %217 = vector.broadcast %36 : f32 to vector<1x256xf32>
    %218 = arith.mulf %217, %216 : vector<1x256xf32>
    %219 = arith.addf %214, %218 : vector<1x256xf32>
    %c0_83 = arith.constant 0 : index
    %c0_84 = arith.constant 0 : index
    %c97_85 = arith.constant 97 : index
    %220 = vector.load %arg6[%c0_83, %c0_84, %c97_85] : memref<2x1x358xf32, #tpu.memory_space<vmem>>, vector<1x1x256xf32>
    %221 = vector.shape_cast %220 : vector<1x1x256xf32> to vector<1x256xf32>
    %222 = vector.broadcast %43 : f32 to vector<1x256xf32>
    %223 = arith.mulf %222, %221 : vector<1x256xf32>
    %224 = arith.addf %219, %223 : vector<1x256xf32>
    %225 = arith.mulf %224, %190 : vector<1x256xf32>
    %226 = arith.addf %189, %225 : vector<1x256xf32>
    %c1_86 = arith.constant 1 : index
    %c0_87 = arith.constant 0 : index
    %c1_88 = arith.constant 1 : index
    %227 = vector.load %arg6[%c1_86, %c0_87, %c1_88] : memref<2x1x358xf32, #tpu.memory_space<vmem>>, vector<1x1x256xf32>
    %228 = vector.shape_cast %227 : vector<1x1x256xf32> to vector<1x256xf32>
    %229 = vector.broadcast %50 : f32 to vector<1x256xf32>
    %230 = arith.mulf %229, %228 : vector<1x256xf32>
    %c1_89 = arith.constant 1 : index
    %c0_90 = arith.constant 0 : index
    %c17_91 = arith.constant 17 : index
    %231 = vector.load %arg6[%c1_89, %c0_90, %c17_91] : memref<2x1x358xf32, #tpu.memory_space<vmem>>, vector<1x1x256xf32>
    %232 = vector.shape_cast %231 : vector<1x1x256xf32> to vector<1x256xf32>
    %233 = vector.broadcast %57 : f32 to vector<1x256xf32>
    %234 = arith.mulf %233, %232 : vector<1x256xf32>
    %235 = arith.addf %230, %234 : vector<1x256xf32>
    %c1_92 = arith.constant 1 : index
    %c0_93 = arith.constant 0 : index
    %c33_94 = arith.constant 33 : index
    %236 = vector.load %arg6[%c1_92, %c0_93, %c33_94] : memref<2x1x358xf32, #tpu.memory_space<vmem>>, vector<1x1x256xf32>
    %237 = vector.shape_cast %236 : vector<1x1x256xf32> to vector<1x256xf32>
    %238 = vector.broadcast %64 : f32 to vector<1x256xf32>
    %239 = arith.mulf %238, %237 : vector<1x256xf32>
    %240 = arith.addf %235, %239 : vector<1x256xf32>
    %c1_95 = arith.constant 1 : index
    %c0_96 = arith.constant 0 : index
    %c49_97 = arith.constant 49 : index
    %241 = vector.load %arg6[%c1_95, %c0_96, %c49_97] : memref<2x1x358xf32, #tpu.memory_space<vmem>>, vector<1x1x256xf32>
    %242 = vector.shape_cast %241 : vector<1x1x256xf32> to vector<1x256xf32>
    %243 = vector.broadcast %71 : f32 to vector<1x256xf32>
    %244 = arith.mulf %243, %242 : vector<1x256xf32>
    %245 = arith.addf %240, %244 : vector<1x256xf32>
    %c1_98 = arith.constant 1 : index
    %c0_99 = arith.constant 0 : index
    %c65_100 = arith.constant 65 : index
    %246 = vector.load %arg6[%c1_98, %c0_99, %c65_100] : memref<2x1x358xf32, #tpu.memory_space<vmem>>, vector<1x1x256xf32>
    %247 = vector.shape_cast %246 : vector<1x1x256xf32> to vector<1x256xf32>
    %248 = vector.broadcast %78 : f32 to vector<1x256xf32>
    %249 = arith.mulf %248, %247 : vector<1x256xf32>
    %250 = arith.addf %245, %249 : vector<1x256xf32>
    %c1_101 = arith.constant 1 : index
    %c0_102 = arith.constant 0 : index
    %c81_103 = arith.constant 81 : index
    %251 = vector.load %arg6[%c1_101, %c0_102, %c81_103] : memref<2x1x358xf32, #tpu.memory_space<vmem>>, vector<1x1x256xf32>
    %252 = vector.shape_cast %251 : vector<1x1x256xf32> to vector<1x256xf32>
    %253 = vector.broadcast %85 : f32 to vector<1x256xf32>
    %254 = arith.mulf %253, %252 : vector<1x256xf32>
    %255 = arith.addf %250, %254 : vector<1x256xf32>
    %c1_104 = arith.constant 1 : index
    %c0_105 = arith.constant 0 : index
    %c97_106 = arith.constant 97 : index
    %256 = vector.load %arg6[%c1_104, %c0_105, %c97_106] : memref<2x1x358xf32, #tpu.memory_space<vmem>>, vector<1x1x256xf32>
    %257 = vector.shape_cast %256 : vector<1x1x256xf32> to vector<1x256xf32>
    %258 = vector.broadcast %92 : f32 to vector<1x256xf32>
    %259 = arith.mulf %258, %257 : vector<1x256xf32>
    %260 = arith.addf %255, %259 : vector<1x256xf32>
    %261 = arith.mulf %260, %190 : vector<1x256xf32>
    %262 = arith.addf %154, %261 : vector<1x256xf32>
    %c2_107 = arith.constant 2 : index
    %c0_108 = arith.constant 0 : index
    %263 = vector.load %arg3[%c2_107, %c0_108] : memref<7x256xf32, #tpu.memory_space<vmem>>, vector<1x256xf32>
    %c0_109 = arith.constant 0 : index
    %c0_110 = arith.constant 0 : index
    %c2_111 = arith.constant 2 : index
    %264 = vector.load %arg6[%c0_109, %c0_110, %c2_111] : memref<2x1x358xf32, #tpu.memory_space<vmem>>, vector<1x1x256xf32>
    %265 = vector.shape_cast %264 : vector<1x1x256xf32> to vector<1x256xf32>
    %266 = vector.broadcast %2 : f32 to vector<1x256xf32>
    %267 = arith.mulf %266, %265 : vector<1x256xf32>
    %c0_112 = arith.constant 0 : index
    %c0_113 = arith.constant 0 : index
    %c18_114 = arith.constant 18 : index
    %268 = vector.load %arg6[%c0_112, %c0_113, %c18_114] : memref<2x1x358xf32, #tpu.memory_space<vmem>>, vector<1x1x256xf32>
    %269 = vector.shape_cast %268 : vector<1x1x256xf32> to vector<1x256xf32>
    %270 = vector.broadcast %9 : f32 to vector<1x256xf32>
    %271 = arith.mulf %270, %269 : vector<1x256xf32>
    %272 = arith.addf %267, %271 : vector<1x256xf32>
    %c0_115 = arith.constant 0 : index
    %c0_116 = arith.constant 0 : index
    %c34_117 = arith.constant 34 : index
    %273 = vector.load %arg6[%c0_115, %c0_116, %c34_117] : memref<2x1x358xf32, #tpu.memory_space<vmem>>, vector<1x1x256xf32>
    %274 = vector.shape_cast %273 : vector<1x1x256xf32> to vector<1x256xf32>
    %275 = vector.broadcast %16 : f32 to vector<1x256xf32>
    %276 = arith.mulf %275, %274 : vector<1x256xf32>
    %277 = arith.addf %272, %276 : vector<1x256xf32>
    %c0_118 = arith.constant 0 : index
    %c0_119 = arith.constant 0 : index
    %c50_120 = arith.constant 50 : index
    %278 = vector.load %arg6[%c0_118, %c0_119, %c50_120] : memref<2x1x358xf32, #tpu.memory_space<vmem>>, vector<1x1x256xf32>
    %279 = vector.shape_cast %278 : vector<1x1x256xf32> to vector<1x256xf32>
    %280 = vector.broadcast %23 : f32 to vector<1x256xf32>
    %281 = arith.mulf %280, %279 : vector<1x256xf32>
    %282 = arith.addf %277, %281 : vector<1x256xf32>
    %c0_121 = arith.constant 0 : index
    %c0_122 = arith.constant 0 : index
    %c66_123 = arith.constant 66 : index
    %283 = vector.load %arg6[%c0_121, %c0_122, %c66_123] : memref<2x1x358xf32, #tpu.memory_space<vmem>>, vector<1x1x256xf32>
    %284 = vector.shape_cast %283 : vector<1x1x256xf32> to vector<1x256xf32>
    %285 = vector.broadcast %30 : f32 to vector<1x256xf32>
    %286 = arith.mulf %285, %284 : vector<1x256xf32>
    %287 = arith.addf %282, %286 : vector<1x256xf32>
    %c0_124 = arith.constant 0 : index
    %c0_125 = arith.constant 0 : index
    %c82_126 = arith.constant 82 : index
    %288 = vector.load %arg6[%c0_124, %c0_125, %c82_126] : memref<2x1x358xf32, #tpu.memory_space<vmem>>, vector<1x1x256xf32>
    %289 = vector.shape_cast %288 : vector<1x1x256xf32> to vector<1x256xf32>
    %290 = vector.broadcast %37 : f32 to vector<1x256xf32>
    %291 = arith.mulf %290, %289 : vector<1x256xf32>
    %292 = arith.addf %287, %291 : vector<1x256xf32>
    %c0_127 = arith.constant 0 : index
    %c0_128 = arith.constant 0 : index
    %c98 = arith.constant 98 : index
    %293 = vector.load %arg6[%c0_127, %c0_128, %c98] : memref<2x1x358xf32, #tpu.memory_space<vmem>>, vector<1x1x256xf32>
    %294 = vector.shape_cast %293 : vector<1x1x256xf32> to vector<1x256xf32>
    %295 = vector.broadcast %44 : f32 to vector<1x256xf32>
    %296 = arith.mulf %295, %294 : vector<1x256xf32>
    %297 = arith.addf %292, %296 : vector<1x256xf32>
    %298 = arith.mulf %297, %263 : vector<1x256xf32>
    %299 = arith.addf %262, %298 : vector<1x256xf32>
    %c1_129 = arith.constant 1 : index
    %c0_130 = arith.constant 0 : index
    %c2_131 = arith.constant 2 : index
    %300 = vector.load %arg6[%c1_129, %c0_130, %c2_131] : memref<2x1x358xf32, #tpu.memory_space<vmem>>, vector<1x1x256xf32>
    %301 = vector.shape_cast %300 : vector<1x1x256xf32> to vector<1x256xf32>
    %302 = vector.broadcast %51 : f32 to vector<1x256xf32>
    %303 = arith.mulf %302, %301 : vector<1x256xf32>
    %c1_132 = arith.constant 1 : index
    %c0_133 = arith.constant 0 : index
    %c18_134 = arith.constant 18 : index
    %304 = vector.load %arg6[%c1_132, %c0_133, %c18_134] : memref<2x1x358xf32, #tpu.memory_space<vmem>>, vector<1x1x256xf32>
    %305 = vector.shape_cast %304 : vector<1x1x256xf32> to vector<1x256xf32>
    %306 = vector.broadcast %58 : f32 to vector<1x256xf32>
    %307 = arith.mulf %306, %305 : vector<1x256xf32>
    %308 = arith.addf %303, %307 : vector<1x256xf32>
    %c1_135 = arith.constant 1 : index
    %c0_136 = arith.constant 0 : index
    %c34_137 = arith.constant 34 : index
    %309 = vector.load %arg6[%c1_135, %c0_136, %c34_137] : memref<2x1x358xf32, #tpu.memory_space<vmem>>, vector<1x1x256xf32>
    %310 = vector.shape_cast %309 : vector<1x1x256xf32> to vector<1x256xf32>
    %311 = vector.broadcast %65 : f32 to vector<1x256xf32>
    %312 = arith.mulf %311, %310 : vector<1x256xf32>
    %313 = arith.addf %308, %312 : vector<1x256xf32>
    %c1_138 = arith.constant 1 : index
    %c0_139 = arith.constant 0 : index
    %c50_140 = arith.constant 50 : index
    %314 = vector.load %arg6[%c1_138, %c0_139, %c50_140] : memref<2x1x358xf32, #tpu.memory_space<vmem>>, vector<1x1x256xf32>
    %315 = vector.shape_cast %314 : vector<1x1x256xf32> to vector<1x256xf32>
    %316 = vector.broadcast %72 : f32 to vector<1x256xf32>
    %317 = arith.mulf %316, %315 : vector<1x256xf32>
    %318 = arith.addf %313, %317 : vector<1x256xf32>
    %c1_141 = arith.constant 1 : index
    %c0_142 = arith.constant 0 : index
    %c66_143 = arith.constant 66 : index
    %319 = vector.load %arg6[%c1_141, %c0_142, %c66_143] : memref<2x1x358xf32, #tpu.memory_space<vmem>>, vector<1x1x256xf32>
    %320 = vector.shape_cast %319 : vector<1x1x256xf32> to vector<1x256xf32>
    %321 = vector.broadcast %79 : f32 to vector<1x256xf32>
    %322 = arith.mulf %321, %320 : vector<1x256xf32>
    %323 = arith.addf %318, %322 : vector<1x256xf32>
    %c1_144 = arith.constant 1 : index
    %c0_145 = arith.constant 0 : index
    %c82_146 = arith.constant 82 : index
    %324 = vector.load %arg6[%c1_144, %c0_145, %c82_146] : memref<2x1x358xf32, #tpu.memory_space<vmem>>, vector<1x1x256xf32>
    %325 = vector.shape_cast %324 : vector<1x1x256xf32> to vector<1x256xf32>
    %326 = vector.broadcast %86 : f32 to vector<1x256xf32>
    %327 = arith.mulf %326, %325 : vector<1x256xf32>
    %328 = arith.addf %323, %327 : vector<1x256xf32>
    %c1_147 = arith.constant 1 : index
    %c0_148 = arith.constant 0 : index
    %c98_149 = arith.constant 98 : index
    %329 = vector.load %arg6[%c1_147, %c0_148, %c98_149] : memref<2x1x358xf32, #tpu.memory_space<vmem>>, vector<1x1x256xf32>
    %330 = vector.shape_cast %329 : vector<1x1x256xf32> to vector<1x256xf32>
    %331 = vector.broadcast %93 : f32 to vector<1x256xf32>
    %332 = arith.mulf %331, %330 : vector<1x256xf32>
    %333 = arith.addf %328, %332 : vector<1x256xf32>
    %334 = arith.mulf %333, %263 : vector<1x256xf32>
    %335 = arith.addf %226, %334 : vector<1x256xf32>
    %c3_150 = arith.constant 3 : index
    %c0_151 = arith.constant 0 : index
    %336 = vector.load %arg3[%c3_150, %c0_151] : memref<7x256xf32, #tpu.memory_space<vmem>>, vector<1x256xf32>
    %c0_152 = arith.constant 0 : index
    %c0_153 = arith.constant 0 : index
    %c3_154 = arith.constant 3 : index
    %337 = vector.load %arg6[%c0_152, %c0_153, %c3_154] : memref<2x1x358xf32, #tpu.memory_space<vmem>>, vector<1x1x256xf32>
    %338 = vector.shape_cast %337 : vector<1x1x256xf32> to vector<1x256xf32>
    %339 = vector.broadcast %3 : f32 to vector<1x256xf32>
    %340 = arith.mulf %339, %338 : vector<1x256xf32>
    %c0_155 = arith.constant 0 : index
    %c0_156 = arith.constant 0 : index
    %c19_157 = arith.constant 19 : index
    %341 = vector.load %arg6[%c0_155, %c0_156, %c19_157] : memref<2x1x358xf32, #tpu.memory_space<vmem>>, vector<1x1x256xf32>
    %342 = vector.shape_cast %341 : vector<1x1x256xf32> to vector<1x256xf32>
    %343 = vector.broadcast %10 : f32 to vector<1x256xf32>
    %344 = arith.mulf %343, %342 : vector<1x256xf32>
    %345 = arith.addf %340, %344 : vector<1x256xf32>
    %c0_158 = arith.constant 0 : index
    %c0_159 = arith.constant 0 : index
    %c35_160 = arith.constant 35 : index
    %346 = vector.load %arg6[%c0_158, %c0_159, %c35_160] : memref<2x1x358xf32, #tpu.memory_space<vmem>>, vector<1x1x256xf32>
    %347 = vector.shape_cast %346 : vector<1x1x256xf32> to vector<1x256xf32>
    %348 = vector.broadcast %17 : f32 to vector<1x256xf32>
    %349 = arith.mulf %348, %347 : vector<1x256xf32>
    %350 = arith.addf %345, %349 : vector<1x256xf32>
    %c0_161 = arith.constant 0 : index
    %c0_162 = arith.constant 0 : index
    %c51_163 = arith.constant 51 : index
    %351 = vector.load %arg6[%c0_161, %c0_162, %c51_163] : memref<2x1x358xf32, #tpu.memory_space<vmem>>, vector<1x1x256xf32>
    %352 = vector.shape_cast %351 : vector<1x1x256xf32> to vector<1x256xf32>
    %353 = vector.broadcast %24 : f32 to vector<1x256xf32>
    %354 = arith.mulf %353, %352 : vector<1x256xf32>
    %355 = arith.addf %350, %354 : vector<1x256xf32>
    %c0_164 = arith.constant 0 : index
    %c0_165 = arith.constant 0 : index
    %c67_166 = arith.constant 67 : index
    %356 = vector.load %arg6[%c0_164, %c0_165, %c67_166] : memref<2x1x358xf32, #tpu.memory_space<vmem>>, vector<1x1x256xf32>
    %357 = vector.shape_cast %356 : vector<1x1x256xf32> to vector<1x256xf32>
    %358 = vector.broadcast %31 : f32 to vector<1x256xf32>
    %359 = arith.mulf %358, %357 : vector<1x256xf32>
    %360 = arith.addf %355, %359 : vector<1x256xf32>
    %c0_167 = arith.constant 0 : index
    %c0_168 = arith.constant 0 : index
    %c83_169 = arith.constant 83 : index
    %361 = vector.load %arg6[%c0_167, %c0_168, %c83_169] : memref<2x1x358xf32, #tpu.memory_space<vmem>>, vector<1x1x256xf32>
    %362 = vector.shape_cast %361 : vector<1x1x256xf32> to vector<1x256xf32>
    %363 = vector.broadcast %38 : f32 to vector<1x256xf32>
    %364 = arith.mulf %363, %362 : vector<1x256xf32>
    %365 = arith.addf %360, %364 : vector<1x256xf32>
    %c0_170 = arith.constant 0 : index
    %c0_171 = arith.constant 0 : index
    %c99 = arith.constant 99 : index
    %366 = vector.load %arg6[%c0_170, %c0_171, %c99] : memref<2x1x358xf32, #tpu.memory_space<vmem>>, vector<1x1x256xf32>
    %367 = vector.shape_cast %366 : vector<1x1x256xf32> to vector<1x256xf32>
    %368 = vector.broadcast %45 : f32 to vector<1x256xf32>
    %369 = arith.mulf %368, %367 : vector<1x256xf32>
    %370 = arith.addf %365, %369 : vector<1x256xf32>
    %371 = arith.mulf %370, %336 : vector<1x256xf32>
    %372 = arith.addf %335, %371 : vector<1x256xf32>
    %c1_172 = arith.constant 1 : index
    %c0_173 = arith.constant 0 : index
    %c3_174 = arith.constant 3 : index
    %373 = vector.load %arg6[%c1_172, %c0_173, %c3_174] : memref<2x1x358xf32, #tpu.memory_space<vmem>>, vector<1x1x256xf32>
    %374 = vector.shape_cast %373 : vector<1x1x256xf32> to vector<1x256xf32>
    %375 = vector.broadcast %52 : f32 to vector<1x256xf32>
    %376 = arith.mulf %375, %374 : vector<1x256xf32>
    %c1_175 = arith.constant 1 : index
    %c0_176 = arith.constant 0 : index
    %c19_177 = arith.constant 19 : index
    %377 = vector.load %arg6[%c1_175, %c0_176, %c19_177] : memref<2x1x358xf32, #tpu.memory_space<vmem>>, vector<1x1x256xf32>
    %378 = vector.shape_cast %377 : vector<1x1x256xf32> to vector<1x256xf32>
    %379 = vector.broadcast %59 : f32 to vector<1x256xf32>
    %380 = arith.mulf %379, %378 : vector<1x256xf32>
    %381 = arith.addf %376, %380 : vector<1x256xf32>
    %c1_178 = arith.constant 1 : index
    %c0_179 = arith.constant 0 : index
    %c35_180 = arith.constant 35 : index
    %382 = vector.load %arg6[%c1_178, %c0_179, %c35_180] : memref<2x1x358xf32, #tpu.memory_space<vmem>>, vector<1x1x256xf32>
    %383 = vector.shape_cast %382 : vector<1x1x256xf32> to vector<1x256xf32>
    %384 = vector.broadcast %66 : f32 to vector<1x256xf32>
    %385 = arith.mulf %384, %383 : vector<1x256xf32>
    %386 = arith.addf %381, %385 : vector<1x256xf32>
    %c1_181 = arith.constant 1 : index
    %c0_182 = arith.constant 0 : index
    %c51_183 = arith.constant 51 : index
    %387 = vector.load %arg6[%c1_181, %c0_182, %c51_183] : memref<2x1x358xf32, #tpu.memory_space<vmem>>, vector<1x1x256xf32>
    %388 = vector.shape_cast %387 : vector<1x1x256xf32> to vector<1x256xf32>
    %389 = vector.broadcast %73 : f32 to vector<1x256xf32>
    %390 = arith.mulf %389, %388 : vector<1x256xf32>
    %391 = arith.addf %386, %390 : vector<1x256xf32>
    %c1_184 = arith.constant 1 : index
    %c0_185 = arith.constant 0 : index
    %c67_186 = arith.constant 67 : index
    %392 = vector.load %arg6[%c1_184, %c0_185, %c67_186] : memref<2x1x358xf32, #tpu.memory_space<vmem>>, vector<1x1x256xf32>
    %393 = vector.shape_cast %392 : vector<1x1x256xf32> to vector<1x256xf32>
    %394 = vector.broadcast %80 : f32 to vector<1x256xf32>
    %395 = arith.mulf %394, %393 : vector<1x256xf32>
    %396 = arith.addf %391, %395 : vector<1x256xf32>
    %c1_187 = arith.constant 1 : index
    %c0_188 = arith.constant 0 : index
    %c83_189 = arith.constant 83 : index
    %397 = vector.load %arg6[%c1_187, %c0_188, %c83_189] : memref<2x1x358xf32, #tpu.memory_space<vmem>>, vector<1x1x256xf32>
    %398 = vector.shape_cast %397 : vector<1x1x256xf32> to vector<1x256xf32>
    %399 = vector.broadcast %87 : f32 to vector<1x256xf32>
    %400 = arith.mulf %399, %398 : vector<1x256xf32>
    %401 = arith.addf %396, %400 : vector<1x256xf32>
    %c1_190 = arith.constant 1 : index
    %c0_191 = arith.constant 0 : index
    %c99_192 = arith.constant 99 : index
    %402 = vector.load %arg6[%c1_190, %c0_191, %c99_192] : memref<2x1x358xf32, #tpu.memory_space<vmem>>, vector<1x1x256xf32>
    %403 = vector.shape_cast %402 : vector<1x1x256xf32> to vector<1x256xf32>
    %404 = vector.broadcast %94 : f32 to vector<1x256xf32>
    %405 = arith.mulf %404, %403 : vector<1x256xf32>
    %406 = arith.addf %401, %405 : vector<1x256xf32>
    %407 = arith.mulf %406, %336 : vector<1x256xf32>
    %408 = arith.addf %299, %407 : vector<1x256xf32>
    %c4_193 = arith.constant 4 : index
    %c0_194 = arith.constant 0 : index
    %409 = vector.load %arg3[%c4_193, %c0_194] : memref<7x256xf32, #tpu.memory_space<vmem>>, vector<1x256xf32>
    %c0_195 = arith.constant 0 : index
    %c0_196 = arith.constant 0 : index
    %c4_197 = arith.constant 4 : index
    %410 = vector.load %arg6[%c0_195, %c0_196, %c4_197] : memref<2x1x358xf32, #tpu.memory_space<vmem>>, vector<1x1x256xf32>
    %411 = vector.shape_cast %410 : vector<1x1x256xf32> to vector<1x256xf32>
    %412 = vector.broadcast %4 : f32 to vector<1x256xf32>
    %413 = arith.mulf %412, %411 : vector<1x256xf32>
    %c0_198 = arith.constant 0 : index
    %c0_199 = arith.constant 0 : index
    %c20_200 = arith.constant 20 : index
    %414 = vector.load %arg6[%c0_198, %c0_199, %c20_200] : memref<2x1x358xf32, #tpu.memory_space<vmem>>, vector<1x1x256xf32>
    %415 = vector.shape_cast %414 : vector<1x1x256xf32> to vector<1x256xf32>
    %416 = vector.broadcast %11 : f32 to vector<1x256xf32>
    %417 = arith.mulf %416, %415 : vector<1x256xf32>
    %418 = arith.addf %413, %417 : vector<1x256xf32>
    %c0_201 = arith.constant 0 : index
    %c0_202 = arith.constant 0 : index
    %c36_203 = arith.constant 36 : index
    %419 = vector.load %arg6[%c0_201, %c0_202, %c36_203] : memref<2x1x358xf32, #tpu.memory_space<vmem>>, vector<1x1x256xf32>
    %420 = vector.shape_cast %419 : vector<1x1x256xf32> to vector<1x256xf32>
    %421 = vector.broadcast %18 : f32 to vector<1x256xf32>
    %422 = arith.mulf %421, %420 : vector<1x256xf32>
    %423 = arith.addf %418, %422 : vector<1x256xf32>
    %c0_204 = arith.constant 0 : index
    %c0_205 = arith.constant 0 : index
    %c52_206 = arith.constant 52 : index
    %424 = vector.load %arg6[%c0_204, %c0_205, %c52_206] : memref<2x1x358xf32, #tpu.memory_space<vmem>>, vector<1x1x256xf32>
    %425 = vector.shape_cast %424 : vector<1x1x256xf32> to vector<1x256xf32>
    %426 = vector.broadcast %25 : f32 to vector<1x256xf32>
    %427 = arith.mulf %426, %425 : vector<1x256xf32>
    %428 = arith.addf %423, %427 : vector<1x256xf32>
    %c0_207 = arith.constant 0 : index
    %c0_208 = arith.constant 0 : index
    %c68_209 = arith.constant 68 : index
    %429 = vector.load %arg6[%c0_207, %c0_208, %c68_209] : memref<2x1x358xf32, #tpu.memory_space<vmem>>, vector<1x1x256xf32>
    %430 = vector.shape_cast %429 : vector<1x1x256xf32> to vector<1x256xf32>
    %431 = vector.broadcast %32 : f32 to vector<1x256xf32>
    %432 = arith.mulf %431, %430 : vector<1x256xf32>
    %433 = arith.addf %428, %432 : vector<1x256xf32>
    %c0_210 = arith.constant 0 : index
    %c0_211 = arith.constant 0 : index
    %c84_212 = arith.constant 84 : index
    %434 = vector.load %arg6[%c0_210, %c0_211, %c84_212] : memref<2x1x358xf32, #tpu.memory_space<vmem>>, vector<1x1x256xf32>
    %435 = vector.shape_cast %434 : vector<1x1x256xf32> to vector<1x256xf32>
    %436 = vector.broadcast %39 : f32 to vector<1x256xf32>
    %437 = arith.mulf %436, %435 : vector<1x256xf32>
    %438 = arith.addf %433, %437 : vector<1x256xf32>
    %c0_213 = arith.constant 0 : index
    %c0_214 = arith.constant 0 : index
    %c100 = arith.constant 100 : index
    %439 = vector.load %arg6[%c0_213, %c0_214, %c100] : memref<2x1x358xf32, #tpu.memory_space<vmem>>, vector<1x1x256xf32>
    %440 = vector.shape_cast %439 : vector<1x1x256xf32> to vector<1x256xf32>
    %441 = vector.broadcast %46 : f32 to vector<1x256xf32>
    %442 = arith.mulf %441, %440 : vector<1x256xf32>
    %443 = arith.addf %438, %442 : vector<1x256xf32>
    %444 = arith.mulf %443, %409 : vector<1x256xf32>
    %445 = arith.addf %408, %444 : vector<1x256xf32>
    %c1_215 = arith.constant 1 : index
    %c0_216 = arith.constant 0 : index
    %c4_217 = arith.constant 4 : index
    %446 = vector.load %arg6[%c1_215, %c0_216, %c4_217] : memref<2x1x358xf32, #tpu.memory_space<vmem>>, vector<1x1x256xf32>
    %447 = vector.shape_cast %446 : vector<1x1x256xf32> to vector<1x256xf32>
    %448 = vector.broadcast %53 : f32 to vector<1x256xf32>
    %449 = arith.mulf %448, %447 : vector<1x256xf32>
    %c1_218 = arith.constant 1 : index
    %c0_219 = arith.constant 0 : index
    %c20_220 = arith.constant 20 : index
    %450 = vector.load %arg6[%c1_218, %c0_219, %c20_220] : memref<2x1x358xf32, #tpu.memory_space<vmem>>, vector<1x1x256xf32>
    %451 = vector.shape_cast %450 : vector<1x1x256xf32> to vector<1x256xf32>
    %452 = vector.broadcast %60 : f32 to vector<1x256xf32>
    %453 = arith.mulf %452, %451 : vector<1x256xf32>
    %454 = arith.addf %449, %453 : vector<1x256xf32>
    %c1_221 = arith.constant 1 : index
    %c0_222 = arith.constant 0 : index
    %c36_223 = arith.constant 36 : index
    %455 = vector.load %arg6[%c1_221, %c0_222, %c36_223] : memref<2x1x358xf32, #tpu.memory_space<vmem>>, vector<1x1x256xf32>
    %456 = vector.shape_cast %455 : vector<1x1x256xf32> to vector<1x256xf32>
    %457 = vector.broadcast %67 : f32 to vector<1x256xf32>
    %458 = arith.mulf %457, %456 : vector<1x256xf32>
    %459 = arith.addf %454, %458 : vector<1x256xf32>
    %c1_224 = arith.constant 1 : index
    %c0_225 = arith.constant 0 : index
    %c52_226 = arith.constant 52 : index
    %460 = vector.load %arg6[%c1_224, %c0_225, %c52_226] : memref<2x1x358xf32, #tpu.memory_space<vmem>>, vector<1x1x256xf32>
    %461 = vector.shape_cast %460 : vector<1x1x256xf32> to vector<1x256xf32>
    %462 = vector.broadcast %74 : f32 to vector<1x256xf32>
    %463 = arith.mulf %462, %461 : vector<1x256xf32>
    %464 = arith.addf %459, %463 : vector<1x256xf32>
    %c1_227 = arith.constant 1 : index
    %c0_228 = arith.constant 0 : index
    %c68_229 = arith.constant 68 : index
    %465 = vector.load %arg6[%c1_227, %c0_228, %c68_229] : memref<2x1x358xf32, #tpu.memory_space<vmem>>, vector<1x1x256xf32>
    %466 = vector.shape_cast %465 : vector<1x1x256xf32> to vector<1x256xf32>
    %467 = vector.broadcast %81 : f32 to vector<1x256xf32>
    %468 = arith.mulf %467, %466 : vector<1x256xf32>
    %469 = arith.addf %464, %468 : vector<1x256xf32>
    %c1_230 = arith.constant 1 : index
    %c0_231 = arith.constant 0 : index
    %c84_232 = arith.constant 84 : index
    %470 = vector.load %arg6[%c1_230, %c0_231, %c84_232] : memref<2x1x358xf32, #tpu.memory_space<vmem>>, vector<1x1x256xf32>
    %471 = vector.shape_cast %470 : vector<1x1x256xf32> to vector<1x256xf32>
    %472 = vector.broadcast %88 : f32 to vector<1x256xf32>
    %473 = arith.mulf %472, %471 : vector<1x256xf32>
    %474 = arith.addf %469, %473 : vector<1x256xf32>
    %c1_233 = arith.constant 1 : index
    %c0_234 = arith.constant 0 : index
    %c100_235 = arith.constant 100 : index
    %475 = vector.load %arg6[%c1_233, %c0_234, %c100_235] : memref<2x1x358xf32, #tpu.memory_space<vmem>>, vector<1x1x256xf32>
    %476 = vector.shape_cast %475 : vector<1x1x256xf32> to vector<1x256xf32>
    %477 = vector.broadcast %95 : f32 to vector<1x256xf32>
    %478 = arith.mulf %477, %476 : vector<1x256xf32>
    %479 = arith.addf %474, %478 : vector<1x256xf32>
    %480 = arith.mulf %479, %409 : vector<1x256xf32>
    %481 = arith.addf %372, %480 : vector<1x256xf32>
    %c5_236 = arith.constant 5 : index
    %c0_237 = arith.constant 0 : index
    %482 = vector.load %arg3[%c5_236, %c0_237] : memref<7x256xf32, #tpu.memory_space<vmem>>, vector<1x256xf32>
    %c0_238 = arith.constant 0 : index
    %c0_239 = arith.constant 0 : index
    %c5_240 = arith.constant 5 : index
    %483 = vector.load %arg6[%c0_238, %c0_239, %c5_240] : memref<2x1x358xf32, #tpu.memory_space<vmem>>, vector<1x1x256xf32>
    %484 = vector.shape_cast %483 : vector<1x1x256xf32> to vector<1x256xf32>
    %485 = vector.broadcast %5 : f32 to vector<1x256xf32>
    %486 = arith.mulf %485, %484 : vector<1x256xf32>
    %c0_241 = arith.constant 0 : index
    %c0_242 = arith.constant 0 : index
    %c21_243 = arith.constant 21 : index
    %487 = vector.load %arg6[%c0_241, %c0_242, %c21_243] : memref<2x1x358xf32, #tpu.memory_space<vmem>>, vector<1x1x256xf32>
    %488 = vector.shape_cast %487 : vector<1x1x256xf32> to vector<1x256xf32>
    %489 = vector.broadcast %12 : f32 to vector<1x256xf32>
    %490 = arith.mulf %489, %488 : vector<1x256xf32>
    %491 = arith.addf %486, %490 : vector<1x256xf32>
    %c0_244 = arith.constant 0 : index
    %c0_245 = arith.constant 0 : index
    %c37_246 = arith.constant 37 : index
    %492 = vector.load %arg6[%c0_244, %c0_245, %c37_246] : memref<2x1x358xf32, #tpu.memory_space<vmem>>, vector<1x1x256xf32>
    %493 = vector.shape_cast %492 : vector<1x1x256xf32> to vector<1x256xf32>
    %494 = vector.broadcast %19 : f32 to vector<1x256xf32>
    %495 = arith.mulf %494, %493 : vector<1x256xf32>
    %496 = arith.addf %491, %495 : vector<1x256xf32>
    %c0_247 = arith.constant 0 : index
    %c0_248 = arith.constant 0 : index
    %c53_249 = arith.constant 53 : index
    %497 = vector.load %arg6[%c0_247, %c0_248, %c53_249] : memref<2x1x358xf32, #tpu.memory_space<vmem>>, vector<1x1x256xf32>
    %498 = vector.shape_cast %497 : vector<1x1x256xf32> to vector<1x256xf32>
    %499 = vector.broadcast %26 : f32 to vector<1x256xf32>
    %500 = arith.mulf %499, %498 : vector<1x256xf32>
    %501 = arith.addf %496, %500 : vector<1x256xf32>
    %c0_250 = arith.constant 0 : index
    %c0_251 = arith.constant 0 : index
    %c69_252 = arith.constant 69 : index
    %502 = vector.load %arg6[%c0_250, %c0_251, %c69_252] : memref<2x1x358xf32, #tpu.memory_space<vmem>>, vector<1x1x256xf32>
    %503 = vector.shape_cast %502 : vector<1x1x256xf32> to vector<1x256xf32>
    %504 = vector.broadcast %33 : f32 to vector<1x256xf32>
    %505 = arith.mulf %504, %503 : vector<1x256xf32>
    %506 = arith.addf %501, %505 : vector<1x256xf32>
    %c0_253 = arith.constant 0 : index
    %c0_254 = arith.constant 0 : index
    %c85_255 = arith.constant 85 : index
    %507 = vector.load %arg6[%c0_253, %c0_254, %c85_255] : memref<2x1x358xf32, #tpu.memory_space<vmem>>, vector<1x1x256xf32>
    %508 = vector.shape_cast %507 : vector<1x1x256xf32> to vector<1x256xf32>
    %509 = vector.broadcast %40 : f32 to vector<1x256xf32>
    %510 = arith.mulf %509, %508 : vector<1x256xf32>
    %511 = arith.addf %506, %510 : vector<1x256xf32>
    %c0_256 = arith.constant 0 : index
    %c0_257 = arith.constant 0 : index
    %c101 = arith.constant 101 : index
    %512 = vector.load %arg6[%c0_256, %c0_257, %c101] : memref<2x1x358xf32, #tpu.memory_space<vmem>>, vector<1x1x256xf32>
    %513 = vector.shape_cast %512 : vector<1x1x256xf32> to vector<1x256xf32>
    %514 = vector.broadcast %47 : f32 to vector<1x256xf32>
    %515 = arith.mulf %514, %513 : vector<1x256xf32>
    %516 = arith.addf %511, %515 : vector<1x256xf32>
    %517 = arith.mulf %516, %482 : vector<1x256xf32>
    %518 = arith.addf %481, %517 : vector<1x256xf32>
    %c1_258 = arith.constant 1 : index
    %c0_259 = arith.constant 0 : index
    %c5_260 = arith.constant 5 : index
    %519 = vector.load %arg6[%c1_258, %c0_259, %c5_260] : memref<2x1x358xf32, #tpu.memory_space<vmem>>, vector<1x1x256xf32>
    %520 = vector.shape_cast %519 : vector<1x1x256xf32> to vector<1x256xf32>
    %521 = vector.broadcast %54 : f32 to vector<1x256xf32>
    %522 = arith.mulf %521, %520 : vector<1x256xf32>
    %c1_261 = arith.constant 1 : index
    %c0_262 = arith.constant 0 : index
    %c21_263 = arith.constant 21 : index
    %523 = vector.load %arg6[%c1_261, %c0_262, %c21_263] : memref<2x1x358xf32, #tpu.memory_space<vmem>>, vector<1x1x256xf32>
    %524 = vector.shape_cast %523 : vector<1x1x256xf32> to vector<1x256xf32>
    %525 = vector.broadcast %61 : f32 to vector<1x256xf32>
    %526 = arith.mulf %525, %524 : vector<1x256xf32>
    %527 = arith.addf %522, %526 : vector<1x256xf32>
    %c1_264 = arith.constant 1 : index
    %c0_265 = arith.constant 0 : index
    %c37_266 = arith.constant 37 : index
    %528 = vector.load %arg6[%c1_264, %c0_265, %c37_266] : memref<2x1x358xf32, #tpu.memory_space<vmem>>, vector<1x1x256xf32>
    %529 = vector.shape_cast %528 : vector<1x1x256xf32> to vector<1x256xf32>
    %530 = vector.broadcast %68 : f32 to vector<1x256xf32>
    %531 = arith.mulf %530, %529 : vector<1x256xf32>
    %532 = arith.addf %527, %531 : vector<1x256xf32>
    %c1_267 = arith.constant 1 : index
    %c0_268 = arith.constant 0 : index
    %c53_269 = arith.constant 53 : index
    %533 = vector.load %arg6[%c1_267, %c0_268, %c53_269] : memref<2x1x358xf32, #tpu.memory_space<vmem>>, vector<1x1x256xf32>
    %534 = vector.shape_cast %533 : vector<1x1x256xf32> to vector<1x256xf32>
    %535 = vector.broadcast %75 : f32 to vector<1x256xf32>
    %536 = arith.mulf %535, %534 : vector<1x256xf32>
    %537 = arith.addf %532, %536 : vector<1x256xf32>
    %c1_270 = arith.constant 1 : index
    %c0_271 = arith.constant 0 : index
    %c69_272 = arith.constant 69 : index
    %538 = vector.load %arg6[%c1_270, %c0_271, %c69_272] : memref<2x1x358xf32, #tpu.memory_space<vmem>>, vector<1x1x256xf32>
    %539 = vector.shape_cast %538 : vector<1x1x256xf32> to vector<1x256xf32>
    %540 = vector.broadcast %82 : f32 to vector<1x256xf32>
    %541 = arith.mulf %540, %539 : vector<1x256xf32>
    %542 = arith.addf %537, %541 : vector<1x256xf32>
    %c1_273 = arith.constant 1 : index
    %c0_274 = arith.constant 0 : index
    %c85_275 = arith.constant 85 : index
    %543 = vector.load %arg6[%c1_273, %c0_274, %c85_275] : memref<2x1x358xf32, #tpu.memory_space<vmem>>, vector<1x1x256xf32>
    %544 = vector.shape_cast %543 : vector<1x1x256xf32> to vector<1x256xf32>
    %545 = vector.broadcast %89 : f32 to vector<1x256xf32>
    %546 = arith.mulf %545, %544 : vector<1x256xf32>
    %547 = arith.addf %542, %546 : vector<1x256xf32>
    %c1_276 = arith.constant 1 : index
    %c0_277 = arith.constant 0 : index
    %c101_278 = arith.constant 101 : index
    %548 = vector.load %arg6[%c1_276, %c0_277, %c101_278] : memref<2x1x358xf32, #tpu.memory_space<vmem>>, vector<1x1x256xf32>
    %549 = vector.shape_cast %548 : vector<1x1x256xf32> to vector<1x256xf32>
    %550 = vector.broadcast %96 : f32 to vector<1x256xf32>
    %551 = arith.mulf %550, %549 : vector<1x256xf32>
    %552 = arith.addf %547, %551 : vector<1x256xf32>
    %553 = arith.mulf %552, %482 : vector<1x256xf32>
    %554 = arith.addf %445, %553 : vector<1x256xf32>
    %c6_279 = arith.constant 6 : index
    %c0_280 = arith.constant 0 : index
    %555 = vector.load %arg3[%c6_279, %c0_280] : memref<7x256xf32, #tpu.memory_space<vmem>>, vector<1x256xf32>
    %c0_281 = arith.constant 0 : index
    %c0_282 = arith.constant 0 : index
    %c6_283 = arith.constant 6 : index
    %556 = vector.load %arg6[%c0_281, %c0_282, %c6_283] : memref<2x1x358xf32, #tpu.memory_space<vmem>>, vector<1x1x256xf32>
    %557 = vector.shape_cast %556 : vector<1x1x256xf32> to vector<1x256xf32>
    %558 = vector.broadcast %6 : f32 to vector<1x256xf32>
    %559 = arith.mulf %558, %557 : vector<1x256xf32>
    %c0_284 = arith.constant 0 : index
    %c0_285 = arith.constant 0 : index
    %c22_286 = arith.constant 22 : index
    %560 = vector.load %arg6[%c0_284, %c0_285, %c22_286] : memref<2x1x358xf32, #tpu.memory_space<vmem>>, vector<1x1x256xf32>
    %561 = vector.shape_cast %560 : vector<1x1x256xf32> to vector<1x256xf32>
    %562 = vector.broadcast %13 : f32 to vector<1x256xf32>
    %563 = arith.mulf %562, %561 : vector<1x256xf32>
    %564 = arith.addf %559, %563 : vector<1x256xf32>
    %c0_287 = arith.constant 0 : index
    %c0_288 = arith.constant 0 : index
    %c38_289 = arith.constant 38 : index
    %565 = vector.load %arg6[%c0_287, %c0_288, %c38_289] : memref<2x1x358xf32, #tpu.memory_space<vmem>>, vector<1x1x256xf32>
    %566 = vector.shape_cast %565 : vector<1x1x256xf32> to vector<1x256xf32>
    %567 = vector.broadcast %20 : f32 to vector<1x256xf32>
    %568 = arith.mulf %567, %566 : vector<1x256xf32>
    %569 = arith.addf %564, %568 : vector<1x256xf32>
    %c0_290 = arith.constant 0 : index
    %c0_291 = arith.constant 0 : index
    %c54_292 = arith.constant 54 : index
    %570 = vector.load %arg6[%c0_290, %c0_291, %c54_292] : memref<2x1x358xf32, #tpu.memory_space<vmem>>, vector<1x1x256xf32>
    %571 = vector.shape_cast %570 : vector<1x1x256xf32> to vector<1x256xf32>
    %572 = vector.broadcast %27 : f32 to vector<1x256xf32>
    %573 = arith.mulf %572, %571 : vector<1x256xf32>
    %574 = arith.addf %569, %573 : vector<1x256xf32>
    %c0_293 = arith.constant 0 : index
    %c0_294 = arith.constant 0 : index
    %c70_295 = arith.constant 70 : index
    %575 = vector.load %arg6[%c0_293, %c0_294, %c70_295] : memref<2x1x358xf32, #tpu.memory_space<vmem>>, vector<1x1x256xf32>
    %576 = vector.shape_cast %575 : vector<1x1x256xf32> to vector<1x256xf32>
    %577 = vector.broadcast %34 : f32 to vector<1x256xf32>
    %578 = arith.mulf %577, %576 : vector<1x256xf32>
    %579 = arith.addf %574, %578 : vector<1x256xf32>
    %c0_296 = arith.constant 0 : index
    %c0_297 = arith.constant 0 : index
    %c86_298 = arith.constant 86 : index
    %580 = vector.load %arg6[%c0_296, %c0_297, %c86_298] : memref<2x1x358xf32, #tpu.memory_space<vmem>>, vector<1x1x256xf32>
    %581 = vector.shape_cast %580 : vector<1x1x256xf32> to vector<1x256xf32>
    %582 = vector.broadcast %41 : f32 to vector<1x256xf32>
    %583 = arith.mulf %582, %581 : vector<1x256xf32>
    %584 = arith.addf %579, %583 : vector<1x256xf32>
    %c0_299 = arith.constant 0 : index
    %c0_300 = arith.constant 0 : index
    %c102 = arith.constant 102 : index
    %585 = vector.load %arg6[%c0_299, %c0_300, %c102] : memref<2x1x358xf32, #tpu.memory_space<vmem>>, vector<1x1x256xf32>
    %586 = vector.shape_cast %585 : vector<1x1x256xf32> to vector<1x256xf32>
    %587 = vector.broadcast %48 : f32 to vector<1x256xf32>
    %588 = arith.mulf %587, %586 : vector<1x256xf32>
    %589 = arith.addf %584, %588 : vector<1x256xf32>
    %590 = arith.mulf %589, %555 : vector<1x256xf32>
    %591 = arith.addf %554, %590 : vector<1x256xf32>
    %c1_301 = arith.constant 1 : index
    %c0_302 = arith.constant 0 : index
    %c6_303 = arith.constant 6 : index
    %592 = vector.load %arg6[%c1_301, %c0_302, %c6_303] : memref<2x1x358xf32, #tpu.memory_space<vmem>>, vector<1x1x256xf32>
    %593 = vector.shape_cast %592 : vector<1x1x256xf32> to vector<1x256xf32>
    %594 = vector.broadcast %55 : f32 to vector<1x256xf32>
    %595 = arith.mulf %594, %593 : vector<1x256xf32>
    %c1_304 = arith.constant 1 : index
    %c0_305 = arith.constant 0 : index
    %c22_306 = arith.constant 22 : index
    %596 = vector.load %arg6[%c1_304, %c0_305, %c22_306] : memref<2x1x358xf32, #tpu.memory_space<vmem>>, vector<1x1x256xf32>
    %597 = vector.shape_cast %596 : vector<1x1x256xf32> to vector<1x256xf32>
    %598 = vector.broadcast %62 : f32 to vector<1x256xf32>
    %599 = arith.mulf %598, %597 : vector<1x256xf32>
    %600 = arith.addf %595, %599 : vector<1x256xf32>
    %c1_307 = arith.constant 1 : index
    %c0_308 = arith.constant 0 : index
    %c38_309 = arith.constant 38 : index
    %601 = vector.load %arg6[%c1_307, %c0_308, %c38_309] : memref<2x1x358xf32, #tpu.memory_space<vmem>>, vector<1x1x256xf32>
    %602 = vector.shape_cast %601 : vector<1x1x256xf32> to vector<1x256xf32>
    %603 = vector.broadcast %69 : f32 to vector<1x256xf32>
    %604 = arith.mulf %603, %602 : vector<1x256xf32>
    %605 = arith.addf %600, %604 : vector<1x256xf32>
    %c1_310 = arith.constant 1 : index
    %c0_311 = arith.constant 0 : index
    %c54_312 = arith.constant 54 : index
    %606 = vector.load %arg6[%c1_310, %c0_311, %c54_312] : memref<2x1x358xf32, #tpu.memory_space<vmem>>, vector<1x1x256xf32>
    %607 = vector.shape_cast %606 : vector<1x1x256xf32> to vector<1x256xf32>
    %608 = vector.broadcast %76 : f32 to vector<1x256xf32>
    %609 = arith.mulf %608, %607 : vector<1x256xf32>
    %610 = arith.addf %605, %609 : vector<1x256xf32>
    %c1_313 = arith.constant 1 : index
    %c0_314 = arith.constant 0 : index
    %c70_315 = arith.constant 70 : index
    %611 = vector.load %arg6[%c1_313, %c0_314, %c70_315] : memref<2x1x358xf32, #tpu.memory_space<vmem>>, vector<1x1x256xf32>
    %612 = vector.shape_cast %611 : vector<1x1x256xf32> to vector<1x256xf32>
    %613 = vector.broadcast %83 : f32 to vector<1x256xf32>
    %614 = arith.mulf %613, %612 : vector<1x256xf32>
    %615 = arith.addf %610, %614 : vector<1x256xf32>
    %c1_316 = arith.constant 1 : index
    %c0_317 = arith.constant 0 : index
    %c86_318 = arith.constant 86 : index
    %616 = vector.load %arg6[%c1_316, %c0_317, %c86_318] : memref<2x1x358xf32, #tpu.memory_space<vmem>>, vector<1x1x256xf32>
    %617 = vector.shape_cast %616 : vector<1x1x256xf32> to vector<1x256xf32>
    %618 = vector.broadcast %90 : f32 to vector<1x256xf32>
    %619 = arith.mulf %618, %617 : vector<1x256xf32>
    %620 = arith.addf %615, %619 : vector<1x256xf32>
    %c1_319 = arith.constant 1 : index
    %c0_320 = arith.constant 0 : index
    %c102_321 = arith.constant 102 : index
    %621 = vector.load %arg6[%c1_319, %c0_320, %c102_321] : memref<2x1x358xf32, #tpu.memory_space<vmem>>, vector<1x1x256xf32>
    %622 = vector.shape_cast %621 : vector<1x1x256xf32> to vector<1x256xf32>
    %623 = vector.broadcast %97 : f32 to vector<1x256xf32>
    %624 = arith.mulf %623, %622 : vector<1x256xf32>
    %625 = arith.addf %620, %624 : vector<1x256xf32>
    %626 = arith.mulf %625, %555 : vector<1x256xf32>
    %627 = arith.addf %518, %626 : vector<1x256xf32>
    %628 = arith.addf %591, %627 : vector<1x256xf32>
    %629 = vector.broadcast %98 : f32 to vector<1x256xf32>
    %630 = arith.mulf %628, %629 : vector<1x256xf32>
    %631 = vector.broadcast %99 : f32 to vector<1x256xf32>
    %632 = arith.addf %630, %631 : vector<1x256xf32>
    %cst_322 = arith.constant 0.000000e+00 : f32
    %633 = vector.broadcast %cst_322 : f32 to vector<1x256xf32>
    %634 = arith.subf %633, %632 : vector<1x256xf32>
    %635 = math.exp %634 : vector<1x256xf32>
    %cst_323 = arith.constant 1.000000e+00 : f32
    %636 = vector.broadcast %cst_323 : f32 to vector<1x256xf32>
    %637 = arith.addf %636, %635 : vector<1x256xf32>
    %cst_324 = arith.constant 1.000000e+00 : f32
    %638 = vector.broadcast %cst_324 : f32 to vector<1x256xf32>
    %639 = arith.divf %638, %637 : vector<1x256xf32>
    %c0_i32_325 = arith.constant 0 : i32
    %c0_i32_326 = arith.constant 0 : i32
    %640 = tpu.memref_slice %arg4[%103, %c0_i32_325, %c0_i32_326] : memref<1x4x256xf32, #tpu.memory_space<vmem>> -> memref<1x4x256xf32, #tpu.memory_space<vmem>>
    %641 = tpu.memref_squeeze %640 : memref<1x4x256xf32, #tpu.memory_space<vmem>> -> memref<4x256xf32, #tpu.memory_space<vmem>>
    %c0_327 = arith.constant 0 : index
    %c0_328 = arith.constant 0 : index
    %642 = vector.load %641[%c0_327, %c0_328] : memref<4x256xf32, #tpu.memory_space<vmem>>, vector<4x256xf32>
    %643 = vector.broadcast %639 : vector<1x256xf32> to vector<4x256xf32>
    %644 = arith.mulf %642, %643 : vector<4x256xf32>
    %c0_i32_329 = arith.constant 0 : i32
    %c0_i32_330 = arith.constant 0 : i32
    %645 = tpu.memref_slice %arg5[%103, %c0_i32_329, %c0_i32_330] : memref<1x4x256xf32, #tpu.memory_space<vmem>> -> memref<1x4x256xf32, #tpu.memory_space<vmem>>
    %646 = tpu.memref_squeeze %645 : memref<1x4x256xf32, #tpu.memory_space<vmem>> -> memref<4x256xf32, #tpu.memory_space<vmem>>
    %c0_331 = arith.constant 0 : index
    %c0_332 = arith.constant 0 : index
    %647 = vector.load %646[%c0_331, %c0_332] : memref<4x256xf32, #tpu.memory_space<vmem>>, vector<4x256xf32>
    tpu.vector_store %646[%c0_331, %c0_332], %644 {strides = array<i32>} : memref<4x256xf32, #tpu.memory_space<vmem>>, vector<4x256xf32>,
    %c1_i32_333 = arith.constant 1 : i32
    return
  }
  func.func @transform_0(%arg0: i32) -> i32 {
    %c0_i32 = arith.constant 0 : i32
    %c0_i32_0 = arith.constant 0 : i32
    return %c0_i32 : i32
  }
  func.func @transform_1(%arg0: i32) -> i32 {
    %c0_i32 = arith.constant 0 : i32
    %c0_i32_0 = arith.constant 0 : i32
    return %c0_i32 : i32
  }
  func.func @transform_2(%arg0: i32) -> (i32, i32) {
    %c0_i32 = arith.constant 0 : i32
    %c0_i32_0 = arith.constant 0 : i32
    %c0_i32_1 = arith.constant 0 : i32
    return %c0_i32, %c0_i32_0 : i32, i32
  }
  func.func @transform_3(%arg0: i32) -> (i32, i32, i32) {
    %c0_i32 = arith.constant 0 : i32
    %c0_i32_0 = arith.constant 0 : i32
    %c0_i32_1 = arith.constant 0 : i32
    return %arg0, %c0_i32, %c0_i32_0 : i32, i32, i32
  }
  func.func @transform_4(%arg0: i32) -> (i32, i32, i32) {
    %c0_i32 = arith.constant 0 : i32
    %c0_i32_0 = arith.constant 0 : i32
    %c0_i32_1 = arith.constant 0 : i32
    return %arg0, %c0_i32, %c0_i32_0 : i32, i32, i32
  }
}

</mosaic_0001>

<llo_original>
// kernel: spatial_gate_forward.1
$region0: #{spatial_gate_forward.1}
  #allocation0 [shape = 'u32[]', space=smem, size = 0x4, offset = 0x4, fixed_abs, tag = 'smem constant byte address 0x4 - core index']
  #allocation1 [shape = 'u32[72,128]{1,0:T(1,128)}', space=vmem, size = 0x9000, scoped, tag = 'internal scratch']
  #allocation2 [shape = 'f32[2,1,358]{2,1,0:T(1,128)}', space=vmem, size = 0xc00, scoped, tag = 'scratch operand']
  %s0 = inlined_call_operand.vmem [shape: f32[98], index: 0, kind: input, shape index: {}]
  %s1 = inlined_call_operand.vmem [shape: f32[2], index: 1, kind: input, shape index: {}]
  %s2 = inlined_call_operand.vmem [shape: f32[7,256], index: 2, kind: input, shape index: {}]
  %s3 = inlined_call_operand.vmem [shape: f32[2,4,256], index: 3, kind: input, shape index: {}]
  %s4 = inlined_call_operand.vmem [shape: f32[2,4,256], index: 4, kind: output, shape index: {}]
  %s5 = sld [smem:[#allocation0]]
  $region57: #{spatial_gate_forward.1} parent=0
    _
  %s7 = ssub.s32 1, %s5
  %s8 = scalar_select 0, %s7, %s5
  $region1: #{spatial_gate_forward.1} parent=0
    #allocation3 [shape = 'u8[512]{0}', space=smem, size = 0x200, scoped, tag = 'input window, operand 0, single buffered']
    #allocation4 [shape = 's32[2]{0}', space=sflag, size = 0x8, scoped, tag = 'scoped memory for spatial_gate_forward.1']
    #allocation5 [shape = 'u8[512]{0}', space=smem, size = 0x200, scoped, tag = 'input window, operand 1, single buffered']
    #allocation6 [shape = 's32[1]{0}', space=sflag, size = 0x4, scoped, tag = 'scoped memory for spatial_gate_forward.1']
    %9 = vsyncpa [#allocation4], 0
    %10 = vsyncpa [#allocation6], 0
    loop: start=0, step=1, limit=4
    $region2: #{spatial_gate_forward.1} parent=1 // loop_pre_header
      _
    $region3: #{spatial_gate_forward.1} parent=1 // loop_header
      %s12 = sphi 0, %s16
      %p13 = scmp.ge.s32.totalorder %s12, 4
      %s20 = sphi 0, %s20
      %s22 = sphi 0, %s20
      %s23 = sphi 0, %s22
      %s37 = sphi 0, %s23
      %s41 = sphi 0, %s41
      %s43 = sphi 0, %s41
      %s44 = sphi 0, %s43
      %s58 = sphi 0, %s44
      %s62 = sphi 0, %s62
      %s64 = sphi 0, %s62
      %s65 = sphi 0, %s64
      %s79 = sphi 0, %s65
      %s85 = sphi 0, %s87
      %s88 = sphi 0, %s85
      %s89 = sphi 0, %s88
      %s105 = sphi 0, %s89
      %s111 = sphi 0, %s113
      %s114 = sphi 0, %s111
      %s115 = sphi 0, %s114
      %s131 = sphi 0, %s115
    $region4: #{spatial_gate_forward.1} parent=1 // loop_header_branch
      %15 = sbr.rel (%p13) target = $region8
    $region5: #{spatial_gate_forward.1} parent=1 // loop_body
      %s17 = ssub.s32 %s12, 1
      %s18 = ssub.s32 %s12, 2
      %s19 = sadd.s32 %s12, 1
      %s21 = sadd.s32 %s20, 1
      %p24 = scmp.eq.s32.totalorder %s12, 1
      %p25 = scmp.ne.s32.totalorder %s20, %s22
      %p26 = scmp.eq.s32.totalorder %s12, 0
      %p27 = por %p25, %p26
      %p28 = scmp.ne.s32.totalorder %s20, %s22
      %p29 = scmp.eq.s32.totalorder %s17, 1
      %p30 = por %p28, %p29
      %p31 = scmp.ne.s32.totalorder %s22, %s23
      %p32 = scmp.eq.s32.totalorder %s17, 0
      %p33 = por %p31, %p32
      %p34 = scmp.ne.s32.totalorder %s22, %s23
      %p35 = scmp.eq.s32.totalorder %s18, 1
      %p36 = por %p34, %p35
      %p38 = scmp.ne.s32.totalorder %s23, %s37
      %p39 = scmp.eq.s32.totalorder %s18, 0
      %p40 = por %p38, %p39
      %s42 = sadd.s32 %s41, 1
      %p45 = scmp.eq.s32.totalorder %s12, 1
      %p46 = scmp.ne.s32.totalorder %s41, %s43
      %p47 = scmp.eq.s32.totalorder %s12, 0
      %p48 = por %p46, %p47
      %p49 = scmp.ne.s32.totalorder %s41, %s43
      %p50 = scmp.eq.s32.totalorder %s17, 1
      %p51 = por %p49, %p50
      %p52 = scmp.ne.s32.totalorder %s43, %s44
      %p53 = scmp.eq.s32.totalorder %s17, 0
      %p54 = por %p52, %p53
      %p55 = scmp.ne.s32.totalorder %s43, %s44
      %p56 = scmp.eq.s32.totalorder %s18, 1
      %p57 = por %p55, %p56
      %p59 = scmp.ne.s32.totalorder %s44, %s58
      %p60 = scmp.eq.s32.totalorder %s18, 0
      %p61 = por %p59, %p60
      %s63 = sadd.s32 %s62, 1
      %p66 = scmp.eq.s32.totalorder %s12, 1
      %p67 = scmp.ne.s32.totalorder %s62, %s64
      %p68 = scmp.eq.s32.totalorder %s12, 0
      %p69 = por %p67, %p68
      %p70 = scmp.ne.s32.totalorder %s62, %s64
      %p71 = scmp.eq.s32.totalorder %s17, 1
      %p72 = por %p70, %p71
      %p73 = scmp.ne.s32.totalorder %s64, %s65
      %p74 = scmp.eq.s32.totalorder %s17, 0
      %p75 = por %p73, %p74
      %p76 = scmp.ne.s32.totalorder %s64, %s65
      %p77 = scmp.eq.s32.totalorder %s18, 1
      %p78 = por %p76, %p77
      %p80 = scmp.ne.s32.totalorder %s65, %s79
      %p81 = scmp.eq.s32.totalorder %s18, 0
      %p82 = por %p80, %p81
      %s83 = ssub.s32 %s12, %s19
      %p84 = scmp.eq.s32.totalorder %s83, 0
      %s86 = sadd.s32 %s85, 1
      %s87 = scalar_select %p84, %s85, %s86
      %p90 = pneg %p84
      %p91 = scmp.eq.s32.totalorder %s12, 1
      %p92 = por %p90, %p91
      %p93 = scmp.ne.s32.totalorder %s85, %s88
      %p94 = scmp.eq.s32.totalorder %s12, 0
      %p95 = por %p93, %p94
      %p96 = scmp.ne.s32.totalorder %s85, %s88
      %p97 = scmp.eq.s32.totalorder %s17, 1
      %p98 = por %p96, %p97
      %p99 = scmp.ne.s32.totalorder %s88, %s89
      %p100 = scmp.eq.s32.totalorder %s17, 0
      %p101 = por %p99, %p100
      %p102 = scmp.ne.s32.totalorder %s88, %s89
      %p103 = scmp.eq.s32.totalorder %s18, 1
      %p104 = por %p102, %p103
      %p106 = scmp.ne.s32.totalorder %s89, %s105
      %p107 = scmp.eq.s32.totalorder %s18, 0
      %p108 = por %p106, %p107
      %s109 = ssub.s32 %s12, %s19
      %p110 = scmp.eq.s32.totalorder %s109, 0
      %s112 = sadd.s32 %s111, 1
      %s113 = scalar_select %p110, %s111, %s112
      %p116 = pneg %p110
      %p117 = scmp.eq.s32.totalorder %s12, 1
      %p118 = por %p116, %p117
      %p119 = scmp.ne.s32.totalorder %s111, %s114
      %p120 = scmp.eq.s32.totalorder %s12, 0
      %p121 = por %p119, %p120
      %p122 = scmp.ne.s32.totalorder %s111, %s114
      %p123 = scmp.eq.s32.totalorder %s17, 1
      %p124 = por %p122, %p123
      %p125 = scmp.ne.s32.totalorder %s114, %s115
      %p126 = scmp.eq.s32.totalorder %s17, 0
      %p127 = por %p125, %p126
      %p128 = scmp.ne.s32.totalorder %s114, %s115
      %p129 = scmp.eq.s32.totalorder %s18, 1
      %p130 = por %p128, %p129
      %p132 = scmp.ne.s32.totalorder %s115, %s131
      %p133 = scmp.eq.s32.totalorder %s18, 0
      %p134 = por %p132, %p133
      %p135 = scmp.le.s32.totalorder 1, %s12
      %p136 = scmp.lt.s32.totalorder %s12, 3
      %p137 = pnand %p135, %p136
      %p138 = pneg %p137
      // Predicated region
      $region9: #{spatial_gate_forward.1} parent=5 // pred_check
        _
      $region10: #{spatial_gate_forward.1} parent=5 // pred_check_branch
        %140 = sbr.rel (%p137) target = $region12
      $region11: #{spatial_gate_forward.1} parent=5 // pred_region
        %s141 = ssub.s32 %s12, 1
        // Predicated region
        $region13: #{spatial_gate_forward.1} parent=11 // pred_check
          %p142 = pneg %p33
        $region14: #{spatial_gate_forward.1} parent=11 // pred_check_branch
          %144 = sbr.rel (%p142) target = $region16
        $region15: #{spatial_gate_forward.1} parent=11 // pred_region
          %146 = vsyncadd [#allocation4], 0
          %s148 = sshll.u32 %s0, 4
          %s149 = int_to_ptr.vmem [resolvable:$true] %s148
          %151 = dma.vmem_to_smem %s149, 16, [#allocation3], [#allocation4]
        $region16: #{spatial_gate_forward.1} parent=11 // pred_fallthru
          _
        // Predicated region
        $region17: #{spatial_gate_forward.1} parent=11 // pred_check
          %p152 = pneg %p54
        $region18: #{spatial_gate_forward.1} parent=11 // pred_check_branch
          %154 = sbr.rel (%p152) target = $region20
        $region19: #{spatial_gate_forward.1} parent=11 // pred_region
          %156 = vsyncadd [#allocation6], 0
          %s158 = sshll.u32 %s1, 4
          %s159 = int_to_ptr.vmem [resolvable:$true] %s158
          %161 = dma.vmem_to_smem %s159, 16, [#allocation5], [#allocation6]
        $region20: #{spatial_gate_forward.1} parent=11 // pred_fallthru
          _
        // Predicated region
        $region21: #{spatial_gate_forward.1} parent=11 // pred_check
          %p162 = pneg %p75
        $region22: #{spatial_gate_forward.1} parent=11 // pred_check_branch
          %164 = sbr.rel (%p162) target = $region24
        $region23: #{spatial_gate_forward.1} parent=11 // pred_region
          _
        $region24: #{spatial_gate_forward.1} parent=11 // pred_fallthru
          _
      $region12: #{spatial_gate_forward.1} parent=5 // pred_fallthru
        _
      %p165 = scmp.lt.s32.totalorder %s12, 2
      // Predicated region
      $region25: #{spatial_gate_forward.1} parent=5 // pred_check
        %p166 = pneg %p165
      $region26: #{spatial_gate_forward.1} parent=5 // pred_check_branch
        %168 = sbr.rel (%p166) target = $region28
      $region27: #{spatial_gate_forward.1} parent=5 // pred_region
        // Predicated region
        $region29: #{spatial_gate_forward.1} parent=27 // pred_check
          %p169 = pneg %p95
        $region30: #{spatial_gate_forward.1} parent=27 // pred_check_branch
          %171 = sbr.rel (%p169) target = $region32
        $region31: #{spatial_gate_forward.1} parent=27 // pred_region
          %p172 = scmp.lt.s32.totalorder %s12, 1
          %s173 = scalar_select %p172, %s12, 1
          %s174 = smul.addr %s173, 2
          %s175 = smul.addr %s174, 4
          %s176 = scalar_lea.vmem %s3, %s175
        $region32: #{spatial_gate_forward.1} parent=27 // pred_fallthru
          _
      $region28: #{spatial_gate_forward.1} parent=5 // pred_fallthru
        _
      %p177 = scmp.le.s32.totalorder 1, %s12
      %p178 = scmp.lt.s32.totalorder %s12, 3
      %p179 = pnand %p177, %p178
      %p180 = pneg %p179
      // Predicated region
      $region33: #{spatial_gate_forward.1} parent=5 // pred_check
        _
      $region34: #{spatial_gate_forward.1} parent=5 // pred_check_branch
        %182 = sbr.rel (%p179) target = $region36
      $region35: #{spatial_gate_forward.1} parent=5 // pred_region
        %s183 = ssub.s32 %s12, 1
        // Predicated region
        $region37: #{spatial_gate_forward.1} parent=35 // pred_check
          %p184 = pneg %p33
        $region38: #{spatial_gate_forward.1} parent=35 // pred_check_branch
          %186 = sbr.rel (%p184) target = $region40
        $region39: #{spatial_gate_forward.1} parent=35 // pred_region
          %188 = dma.done [#allocation4], 16
        $region40: #{spatial_gate_forward.1} parent=35 // pred_fallthru
          _
        // Predicated region
        $region41: #{spatial_gate_forward.1} parent=35 // pred_check
          %p189 = pneg %p54
        $region42: #{spatial_gate_forward.1} parent=35 // pred_check_branch
          %191 = sbr.rel (%p189) target = $region44
        $region43: #{spatial_gate_forward.1} parent=35 // pred_region
          %193 = dma.done [#allocation6], 16
        $region44: #{spatial_gate_forward.1} parent=35 // pred_fallthru
          _
        %194 = sfence
        %p195 = pneg %p33
        %p196 = pneg %p30
        %p197 = pneg %p54
        %p198 = pneg %p51
        %p199 = pneg %p75
        %p200 = pneg %p72
        %p201 = scmp.lt.s32.totalorder %s17, 1
        %s202 = scalar_select %p201, %s17, 1
        %s203 = smul.addr %s202, 2
        %s204 = smul.addr %s203, 4
        %s205 = scalar_lea.vmem %s3, %s204
        %p206 = pneg %p101
        %p207 = pneg %p98
        %p208 = pneg %p127
        %p209 = pneg %p124
        %p210 = scmp.lt.s32.totalorder %s17, 1
        %s211 = scalar_select %p210, %s17, 1
        %s212 = smul.addr %s211, 2
        %s213 = smul.addr %s212, 4
        %s214 = scalar_lea.vmem %s4, %s213
        %p215 = scmp.lt.s32.totalorder %s17, 1
        %s216 = scalar_select %p215, %s17, 1
        %s217 = smul.addr %s216, 2
        %s218 = smul.addr %s217, 4
        %s219 = scalar_lea.vmem %s3, %s218
        %p220 = scmp.lt.s32.totalorder %s17, 1
        %s221 = scalar_select %p220, %s17, 1
        %s222 = smul.addr %s221, 2
        %s223 = smul.addr %s222, 4
        %s224 = scalar_lea.vmem %s4, %s223
        %s225 = sld [smem:[#allocation3]]
        %s226 = sld [smem:[#allocation3 + $0x1]]
        %s227 = sld [smem:[#allocation3 + $0x2]]
        %s228 = sld [smem:[#allocation3 + $0x3]]
        %s229 = sld [smem:[#allocation3 + $0x4]]
        %s230 = sld [smem:[#allocation3 + $0x5]]
        %s231 = sld [smem:[#allocation3 + $0x6]]
        %s232 = sld [smem:[#allocation3 + $0x7]]
        %s233 = sld [smem:[#allocation3 + $0x8]]
        %s234 = sld [smem:[#allocation3 + $0x9]]
        %s235 = sld [smem:[#allocation3 + $0xa]]
        %s236 = sld [smem:[#allocation3 + $0xb]]
        %s237 = sld [smem:[#allocation3 + $0xc]]
        %s238 = sld [smem:[#allocation3 + $0xd]]
        %s239 = sld [smem:[#allocation3 + $0xe]]
        %s240 = sld [smem:[#allocation3 + $0xf]]
        %s241 = sld [smem:[#allocation3 + $0x10]]
        %s242 = sld [smem:[#allocation3 + $0x11]]
        %s243 = sld [smem:[#allocation3 + $0x12]]
        %s244 = sld [smem:[#allocation3 + $0x13]]
        %s245 = sld [smem:[#allocation3 + $0x14]]
        %s246 = sld [smem:[#allocation3 + $0x15]]
        %s247 = sld [smem:[#allocation3 + $0x16]]
        %s248 = sld [smem:[#allocation3 + $0x17]]
        %s249 = sld [smem:[#allocation3 + $0x18]]
        %s250 = sld [smem:[#allocation3 + $0x19]]
        %s251 = sld [smem:[#allocation3 + $0x1a]]
        %s252 = sld [smem:[#allocation3 + $0x1b]]
        %s253 = sld [smem:[#allocation3 + $0x1c]]
        %s254 = sld [smem:[#allocation3 + $0x1d]]
        %s255 = sld [smem:[#allocation3 + $0x1e]]
        %s256 = sld [smem:[#allocation3 + $0x1f]]
        %s257 = sld [smem:[#allocation3 + $0x20]]
        %s258 = sld [smem:[#allocation3 + $0x21]]
        %s259 = sld [smem:[#allocation3 + $0x22]]
        %s260 = sld [smem:[#allocation3 + $0x23]]
        %s261 = sld [smem:[#allocation3 + $0x24]]
        %s262 = sld [smem:[#allocation3 + $0x25]]
        %s263 = sld [smem:[#allocation3 + $0x26]]
        %s264 = sld [smem:[#allocation3 + $0x27]]
        %s265 = sld [smem:[#allocation3 + $0x28]]
        %s266 = sld [smem:[#allocation3 + $0x29]]
        %s267 = sld [smem:[#allocation3 + $0x2a]]
        %s268 = sld [smem:[#allocation3 + $0x2b]]
        %s269 = sld [smem:[#allocation3 + $0x2c]]
        %s270 = sld [smem:[#allocation3 + $0x2d]]
        %s271 = sld [smem:[#allocation3 + $0x2e]]
        %s272 = sld [smem:[#allocation3 + $0x2f]]
        %s273 = sld [smem:[#allocation3 + $0x30]]
        %s274 = sld [smem:[#allocation3 + $0x31]]
        %s275 = sld [smem:[#allocation3 + $0x32]]
        %s276 = sld [smem:[#allocation3 + $0x33]]
        %s277 = sld [smem:[#allocation3 + $0x34]]
        %s278 = sld [smem:[#allocation3 + $0x35]]
        %s279 = sld [smem:[#allocation3 + $0x36]]
        %s280 = sld [smem:[#allocation3 + $0x37]]
        %s281 = sld [smem:[#allocation3 + $0x38]]
        %s282 = sld [smem:[#allocation3 + $0x39]]
        %s283 = sld [smem:[#allocation3 + $0x3a]]
        %s284 = sld [smem:[#allocation3 + $0x3b]]
        %s285 = sld [smem:[#allocation3 + $0x3c]]
        %s286 = sld [smem:[#allocation3 + $0x3d]]
        %s287 = sld [smem:[#allocation3 + $0x3e]]
        %s288 = sld [smem:[#allocation3 + $0x3f]]
        %s289 = sld [smem:[#allocation3 + $0x40]]
        %s290 = sld [smem:[#allocation3 + $0x41]]
        %s291 = sld [smem:[#allocation3 + $0x42]]
        %s292 = sld [smem:[#allocation3 + $0x43]]
        %s293 = sld [smem:[#allocation3 + $0x44]]
        %s294 = sld [smem:[#allocation3 + $0x45]]
        %s295 = sld [smem:[#allocation3 + $0x46]]
        %s296 = sld [smem:[#allocation3 + $0x47]]
        %s297 = sld [smem:[#allocation3 + $0x48]]
        %s298 = sld [smem:[#allocation3 + $0x49]]
        %s299 = sld [smem:[#allocation3 + $0x4a]]
        %s300 = sld [smem:[#allocation3 + $0x4b]]
        %s301 = sld [smem:[#allocation3 + $0x4c]]
        %s302 = sld [smem:[#allocation3 + $0x4d]]
        %s303 = sld [smem:[#allocation3 + $0x4e]]
        %s304 = sld [smem:[#allocation3 + $0x4f]]
        %s305 = sld [smem:[#allocation3 + $0x50]]
        %s306 = sld [smem:[#allocation3 + $0x51]]
        %s307 = sld [smem:[#allocation3 + $0x52]]
        %s308 = sld [smem:[#allocation3 + $0x53]]
        %s309 = sld [smem:[#allocation3 + $0x54]]
        %s310 = sld [smem:[#allocation3 + $0x55]]
        %s311 = sld [smem:[#allocation3 + $0x56]]
        %s312 = sld [smem:[#allocation3 + $0x57]]
        %s313 = sld [smem:[#allocation3 + $0x58]]
        %s314 = sld [smem:[#allocation3 + $0x59]]
        %s315 = sld [smem:[#allocation3 + $0x5a]]
        %s316 = sld [smem:[#allocation3 + $0x5b]]
        %s317 = sld [smem:[#allocation3 + $0x5c]]
        %s318 = sld [smem:[#allocation3 + $0x5d]]
        %s319 = sld [smem:[#allocation3 + $0x5e]]
        %s320 = sld [smem:[#allocation3 + $0x5f]]
        %s321 = sld [smem:[#allocation3 + $0x60]]
        %s322 = sld [smem:[#allocation3 + $0x61]]
        %s323 = sld [smem:[#allocation5]]
        %s324 = sld [smem:[#allocation5 + $0x1]]
        %v325 = vlaneseq
        %vm326 = vcmp.ge.s32.totalorder %v325, 0
        %vm327 = vcmp.lt.s32.totalorder %v325, 358
        %vm328 = vmand %vm326, %vm327
        %329 = vst.msk [vmem:[#allocation2] sm:$0x7] %vm328, 0.0
        %330 = vst.msk [vmem:[#allocation2 + $0x3] sm:$0x7] %vm328, 0.0
        %v331 = vld [vmem:[%s219] sm:$0xff]
        %333 = vst [vmem:[#allocation1] ss:$2 sm:$0xff] %v331
        %v334 = vld.sshfl [vmem:[#allocation1] sm:$0xff pattern:$0x75316420]
        %v335 = vld.sshfl [vmem:[#allocation1 + $0x8] sm:$0xff pattern:$0x75316420]
        %vm338 = vcmask 1043456
        %v339 = vsel %vm338, %v334, -inf
        %v340 = vrot.slane %v339, 4
        %v341 = vmax.f32 %v339, %v340
        %v342 = vrot.slane %v341, 2
        %v343 = vmax.f32 %v341, %v342
        %v344 = vrot.slane %v343, 1
        %v345 = vmax.f32 %v343, %v344
        %v346 = vsel %vm338, %v335, -inf
        %v347 = vrot.slane %v346, 4
        %v348 = vmax.f32 %v346, %v347
        %v349 = vrot.slane %v348, 2
        %v350 = vmax.f32 %v348, %v349
        %v351 = vrot.slane %v350, 1
        %v352 = vmax.f32 %v350, %v351
        %353 = vst [vmem:[#allocation1] ss:$2 sm:$0xff] %v331
        %v354 = vld.sshfl [vmem:[#allocation1] sm:$0xff pattern:$0x75316420]
        %v355 = vld.sshfl [vmem:[#allocation1 + $0x8] sm:$0xff pattern:$0x75316420]
        %v358 = vsel %vm338, %v354, 0.0
        %v359 = vrot.slane %v358, 4
        %v360 = vadd.f32 %v358, %v359
        %v361 = vrot.slane %v360, 2
        %v362 = vadd.f32 %v360, %v361
        %v363 = vrot.slane %v362, 1
        %v364 = vadd.f32 %v362, %v363
        %v365 = vsel %vm338, %v355, 0.0
        %v366 = vrot.slane %v365, 4
        %v367 = vadd.f32 %v365, %v366
        %v368 = vrot.slane %v367, 2
        %v369 = vadd.f32 %v367, %v368
        %v370 = vrot.slane %v369, 1
        %v371 = vadd.f32 %v369, %v370
        %v374 = vrot.slane %v352, 7
        %vm375 = vcmask 1040384
        %v376 = vsel %vm375, %v345, %v374
        %377 = vrot.lane.b32.xlu0 %v376, 51
        %v378 = vpop.permute.xlu0 %377
        %v379 = vrot.slane %v378, 7
        %vm380 = vcmask 416768
        %v381 = vsel %vm380, %v379, %v378
        %vm383 = vcmp.ge.s32.totalorder %v325, 51
        %vm384 = vcmp.lt.s32.totalorder %v325, 307
        %vm385 = vmand %vm383, %vm384
        %386 = vst.msk [vmem:[#allocation2] sm:$0x7] %vm385, %v381
        %v387 = vmul.f32 %v364, 0.25
        %v388 = vmul.f32 %v371, 0.25
        %v391 = vrot.slane %v388, 7
        %v392 = vsel %vm375, %v387, %v391
        %393 = vrot.lane.b32.xlu0 %v392, 51
        %v394 = vpop.permute.xlu0 %393
        %v395 = vrot.slane %v394, 7
        %v396 = vsel %vm380, %v395, %v394
        %s398 = scalar_lea.vmem [#allocation2], 3
        %399 = vst.msk [vmem:[%s398] sm:$0x7] %vm385, %v396
        %v400 = vld [vmem:[%s2] ss:$8 sm:$0x3]
        %v401 = vld [vmem:[#allocation2] sm:$0x3]
        %v402 = vstv %s225
        %v403 = vmul.f32 %v402, %v401
        %v404 = vld [vmem:[#allocation2] sm:$0x7]
        %v405 = vstv %s232
        %v406 = vmul.f32 %v405, %v404
        %408 = vrot.lane.b32.xlu0 %v406, 112
        %v409 = vpop.permute.xlu0 %408
        %v410 = vrot.slane %v409, 1
        %vm411 = vcmask 916480
        %v412 = vsel %vm411, %v409, %v410
        %v414 = vadd.f32 %v403, %v412
        %v415 = vstv %s239
        %v416 = vmul.f32 %v415, %v404
        %418 = vrot.lane.b32.xlu0 %v416, 96
        %v419 = vpop.permute.xlu0 %418
        %v420 = vrot.slane %v419, 1
        %vm421 = vcmask 785408
        %v422 = vsel %vm421, %v419, %v420
        %v424 = vadd.f32 %v414, %v422
        %v425 = vstv %s246
        %v426 = vmul.f32 %v425, %v404
        %428 = vrot.lane.b32.xlu0 %v426, 80
        %v429 = vpop.permute.xlu0 %428
        %v430 = vrot.slane %v429, 1
        %vm431 = vcmask 654336
        %v432 = vsel %vm431, %v429, %v430
        %v434 = vadd.f32 %v424, %v432
        %v435 = vstv %s253
        %v436 = vmul.f32 %v435, %v404
        %438 = vrot.lane.b32.xlu0 %v436, 64
        %v439 = vpop.permute.xlu0 %438
        %v440 = vrot.slane %v439, 1
        %vm441 = vcmask 523264
        %v442 = vsel %vm441, %v439, %v440
        %v444 = vadd.f32 %v434, %v442
        %v445 = vstv %s260
        %v446 = vmul.f32 %v445, %v404
        %448 = vrot.lane.b32.xlu0 %v446, 48
        %v449 = vpop.permute.xlu0 %448
        %v450 = vrot.slane %v449, 1
        %vm451 = vcmask 392192
        %v452 = vsel %vm451, %v449, %v450
        %v454 = vadd.f32 %v444, %v452
        %v455 = vstv %s267
        %v456 = vmul.f32 %v455, %v404
        %458 = vrot.lane.b32.xlu0 %v456, 32
        %v459 = vpop.permute.xlu0 %458
        %v460 = vrot.slane %v459, 1
        %vm461 = vcmask 261120
        %v462 = vsel %vm461, %v459, %v460
        %v464 = vadd.f32 %v454, %v462
        %v465 = vmul.f32 %v464, %v400
        %v466 = vld [vmem:[%s398] sm:$0x3]
        %v467 = vstv %s274
        %v468 = vmul.f32 %v467, %v466
        %v469 = vld [vmem:[%s398] sm:$0x7]
        %v470 = vstv %s281
        %v471 = vmul.f32 %v470, %v469
        %473 = vrot.lane.b32.xlu0 %v471, 112
        %v474 = vpop.permute.xlu0 %473
        %v475 = vrot.slane %v474, 1
        %v476 = vsel %vm411, %v474, %v475
        %v478 = vadd.f32 %v468, %v476
        %v479 = vstv %s288
        %v480 = vmul.f32 %v479, %v469
        %482 = vrot.lane.b32.xlu0 %v480, 96
        %v483 = vpop.permute.xlu0 %482
        %v484 = vrot.slane %v483, 1
        %v485 = vsel %vm421, %v483, %v484
        %v487 = vadd.f32 %v478, %v485
        %v488 = vstv %s295
        %v489 = vmul.f32 %v488, %v469
        %491 = vrot.lane.b32.xlu0 %v489, 80
        %v492 = vpop.permute.xlu0 %491
        %v493 = vrot.slane %v492, 1
        %v494 = vsel %vm431, %v492, %v493
        %v496 = vadd.f32 %v487, %v494
        %v497 = vstv %s302
        %v498 = vmul.f32 %v497, %v469
        %500 = vrot.lane.b32.xlu0 %v498, 64
        %v501 = vpop.permute.xlu0 %500
        %v502 = vrot.slane %v501, 1
        %v503 = vsel %vm441, %v501, %v502
        %v505 = vadd.f32 %v496, %v503
        %v506 = vstv %s309
        %v507 = vmul.f32 %v506, %v469
        %509 = vrot.lane.b32.xlu0 %v507, 48
        %v510 = vpop.permute.xlu0 %509
        %v511 = vrot.slane %v510, 1
        %v512 = vsel %vm451, %v510, %v511
        %v514 = vadd.f32 %v505, %v512
        %v515 = vstv %s316
        %v516 = vmul.f32 %v515, %v469
        %518 = vrot.lane.b32.xlu0 %v516, 32
        %v519 = vpop.permute.xlu0 %518
        %v520 = vrot.slane %v519, 1
        %v521 = vsel %vm461, %v519, %v520
        %v523 = vadd.f32 %v514, %v521
        %v524 = vmul.f32 %v523, %v400
        %s525 = scalar_lea.vmem %s2, 1
        %v526 = vld [vmem:[%s525] ss:$8 sm:$0x3]
        %v527 = vstv %s226
        %v528 = vmul.f32 %v527, %v404
        %v529 = vstv %s233
        %v530 = vmul.f32 %v529, %v404
        %532 = vrot.lane.b32.xlu0 %v530, 112
        %v533 = vpop.permute.xlu0 %532
        %v534 = vrot.slane %v533, 1
        %v535 = vsel %vm411, %v533, %v534
        %v537 = vadd.f32 %v528, %v535
        %v538 = vstv %s240
        %v539 = vmul.f32 %v538, %v404
        %541 = vrot.lane.b32.xlu0 %v539, 96
        %v542 = vpop.permute.xlu0 %541
        %v543 = vrot.slane %v542, 1
        %v544 = vsel %vm421, %v542, %v543
        %v546 = vadd.f32 %v537, %v544
        %v547 = vstv %s247
        %v548 = vmul.f32 %v547, %v404
        %550 = vrot.lane.b32.xlu0 %v548, 80
        %v551 = vpop.permute.xlu0 %550
        %v552 = vrot.slane %v551, 1
        %v553 = vsel %vm431, %v551, %v552
        %v555 = vadd.f32 %v546, %v553
        %v556 = vstv %s254
        %v557 = vmul.f32 %v556, %v404
        %559 = vrot.lane.b32.xlu0 %v557, 64
        %v560 = vpop.permute.xlu0 %559
        %v561 = vrot.slane %v560, 1
        %v562 = vsel %vm441, %v560, %v561
        %v564 = vadd.f32 %v555, %v562
        %v565 = vstv %s261
        %v566 = vmul.f32 %v565, %v404
        %568 = vrot.lane.b32.xlu0 %v566, 48
        %v569 = vpop.permute.xlu0 %568
        %v570 = vrot.slane %v569, 1
        %v571 = vsel %vm451, %v569, %v570
        %v573 = vadd.f32 %v564, %v571
        %v574 = vstv %s268
        %v575 = vmul.f32 %v574, %v404
        %577 = vrot.lane.b32.xlu0 %v575, 32
        %v578 = vpop.permute.xlu0 %577
        %v579 = vrot.slane %v578, 1
        %v580 = vsel %vm461, %v578, %v579
        %v582 = vadd.f32 %v573, %v580
        %584 = vrot.lane.b32.xlu0 %v526, 1
        %v585 = vpop.permute.xlu0 %584
        %v586 = vrot.slane %v585, 7
        %vm587 = vcmask 7168
        %v588 = vsel %vm587, %v586, %v585
        %v590 = vmul.f32 %v582, %v588
        %592 = vrot.lane.b32.xlu0 %v590, 127
        %v593 = vpop.permute.xlu0 %592
        %v594 = vrot.slane %v593, 1
        %vm595 = vcmask 1039360
        %v596 = vsel %vm595, %v593, %v594
        %v598 = vadd.f32 %v524, %v596
        %v599 = vstv %s275
        %v600 = vmul.f32 %v599, %v469
        %v601 = vstv %s282
        %v602 = vmul.f32 %v601, %v469
        %604 = vrot.lane.b32.xlu0 %v602, 112
        %v605 = vpop.permute.xlu0 %604
        %v606 = vrot.slane %v605, 1
        %v607 = vsel %vm411, %v605, %v606
        %v609 = vadd.f32 %v600, %v607
        %v610 = vstv %s289
        %v611 = vmul.f32 %v610, %v469
        %613 = vrot.lane.b32.xlu0 %v611, 96
        %v614 = vpop.permute.xlu0 %613
        %v615 = vrot.slane %v614, 1
        %v616 = vsel %vm421, %v614, %v615
        %v618 = vadd.f32 %v609, %v616
        %v619 = vstv %s296
        %v620 = vmul.f32 %v619, %v469
        %622 = vrot.lane.b32.xlu0 %v620, 80
        %v623 = vpop.permute.xlu0 %622
        %v624 = vrot.slane %v623, 1
        %v625 = vsel %vm431, %v623, %v624
        %v627 = vadd.f32 %v618, %v625
        %v628 = vstv %s303
        %v629 = vmul.f32 %v628, %v469
        %631 = vrot.lane.b32.xlu0 %v629, 64
        %v632 = vpop.permute.xlu0 %631
        %v633 = vrot.slane %v632, 1
        %v634 = vsel %vm441, %v632, %v633
        %v636 = vadd.f32 %v627, %v634
        %v637 = vstv %s310
        %v638 = vmul.f32 %v637, %v469
        %640 = vrot.lane.b32.xlu0 %v638, 48
        %v641 = vpop.permute.xlu0 %640
        %v642 = vrot.slane %v641, 1
        %v643 = vsel %vm451, %v641, %v642
        %v645 = vadd.f32 %v636, %v643
        %v646 = vstv %s317
        %v647 = vmul.f32 %v646, %v469
        %649 = vrot.lane.b32.xlu0 %v647, 32
        %v650 = vpop.permute.xlu0 %649
        %v651 = vrot.slane %v650, 1
        %v652 = vsel %vm461, %v650, %v651
        %v654 = vadd.f32 %v645, %v652
        %v655 = vmul.f32 %v654, %v588
        %657 = vrot.lane.b32.xlu0 %v655, 127
        %v658 = vpop.permute.xlu0 %657
        %v659 = vrot.slane %v658, 1
        %v660 = vsel %vm595, %v658, %v659
        %v662 = vadd.f32 %v465, %v660
        %s663 = scalar_lea.vmem %s2, 2
        %v664 = vld [vmem:[%s663] ss:$8 sm:$0x3]
        %v665 = vstv %s227
        %v666 = vmul.f32 %v665, %v404
        %v667 = vstv %s234
        %v668 = vmul.f32 %v667, %v404
        %670 = vrot.lane.b32.xlu0 %v668, 112
        %v671 = vpop.permute.xlu0 %670
        %v672 = vrot.slane %v671, 1
        %v673 = vsel %vm411, %v671, %v672
        %v675 = vadd.f32 %v666, %v673
        %v676 = vstv %s241
        %v677 = vmul.f32 %v676, %v404
        %679 = vrot.lane.b32.xlu0 %v677, 96
        %v680 = vpop.permute.xlu0 %679
        %v681 = vrot.slane %v680, 1
        %v682 = vsel %vm421, %v680, %v681
        %v684 = vadd.f32 %v675, %v682
        %v685 = vstv %s248
        %v686 = vmul.f32 %v685, %v404
        %688 = vrot.lane.b32.xlu0 %v686, 80
        %v689 = vpop.permute.xlu0 %688
        %v690 = vrot.slane %v689, 1
        %v691 = vsel %vm431, %v689, %v690
        %v693 = vadd.f32 %v684, %v691
        %v694 = vstv %s255
        %v695 = vmul.f32 %v694, %v404
        %697 = vrot.lane.b32.xlu0 %v695, 64
        %v698 = vpop.permute.xlu0 %697
        %v699 = vrot.slane %v698, 1
        %v700 = vsel %vm441, %v698, %v699
        %v702 = vadd.f32 %v693, %v700
        %v703 = vstv %s262
        %v704 = vmul.f32 %v703, %v404
        %706 = vrot.lane.b32.xlu0 %v704, 48
        %v707 = vpop.permute.xlu0 %706
        %v708 = vrot.slane %v707, 1
        %v709 = vsel %vm451, %v707, %v708
        %v711 = vadd.f32 %v702, %v709
        %v712 = vstv %s269
        %v713 = vmul.f32 %v712, %v404
        %715 = vrot.lane.b32.xlu0 %v713, 32
        %v716 = vpop.permute.xlu0 %715
        %v717 = vrot.slane %v716, 1
        %v718 = vsel %vm461, %v716, %v717
        %v720 = vadd.f32 %v711, %v718
        %722 = vrot.lane.b32.xlu0 %v664, 2
        %v723 = vpop.permute.xlu0 %722
        %v724 = vrot.slane %v723, 7
        %vm725 = vcmask 15360
        %v726 = vsel %vm725, %v724, %v723
        %v728 = vmul.f32 %v720, %v726
        %730 = vrot.lane.b32.xlu0 %v728, 126
        %v731 = vpop.permute.xlu0 %730
        %v732 = vrot.slane %v731, 1
        %vm733 = vcmask 1031168
        %v734 = vsel %vm733, %v731, %v732
        %v736 = vadd.f32 %v662, %v734
        %v737 = vstv %s276
        %v738 = vmul.f32 %v737, %v469
        %v739 = vstv %s283
        %v740 = vmul.f32 %v739, %v469
        %742 = vrot.lane.b32.xlu0 %v740, 112
        %v743 = vpop.permute.xlu0 %742
        %v744 = vrot.slane %v743, 1
        %v745 = vsel %vm411, %v743, %v744
        %v747 = vadd.f32 %v738, %v745
        %v748 = vstv %s290
        %v749 = vmul.f32 %v748, %v469
        %751 = vrot.lane.b32.xlu0 %v749, 96
        %v752 = vpop.permute.xlu0 %751
        %v753 = vrot.slane %v752, 1
        %v754 = vsel %vm421, %v752, %v753
        %v756 = vadd.f32 %v747, %v754
        %v757 = vstv %s297
        %v758 = vmul.f32 %v757, %v469
        %760 = vrot.lane.b32.xlu0 %v758, 80
        %v761 = vpop.permute.xlu0 %760
        %v762 = vrot.slane %v761, 1
        %v763 = vsel %vm431, %v761, %v762
        %v765 = vadd.f32 %v756, %v763
        %v766 = vstv %s304
        %v767 = vmul.f32 %v766, %v469
        %769 = vrot.lane.b32.xlu0 %v767, 64
        %v770 = vpop.permute.xlu0 %769
        %v771 = vrot.slane %v770, 1
        %v772 = vsel %vm441, %v770, %v771
        %v774 = vadd.f32 %v765, %v772
        %v775 = vstv %s311
        %v776 = vmul.f32 %v775, %v469
        %778 = vrot.lane.b32.xlu0 %v776, 48
        %v779 = vpop.permute.xlu0 %778
        %v780 = vrot.slane %v779, 1
        %v781 = vsel %vm451, %v779, %v780
        %v783 = vadd.f32 %v774, %v781
        %v784 = vstv %s318
        %v785 = vmul.f32 %v784, %v469
        %787 = vrot.lane.b32.xlu0 %v785, 32
        %v788 = vpop.permute.xlu0 %787
        %v789 = vrot.slane %v788, 1
        %v790 = vsel %vm461, %v788, %v789
        %v792 = vadd.f32 %v783, %v790
        %v793 = vmul.f32 %v792, %v726
        %795 = vrot.lane.b32.xlu0 %v793, 126
        %v796 = vpop.permute.xlu0 %795
        %v797 = vrot.slane %v796, 1
        %v798 = vsel %vm733, %v796, %v797
        %v800 = vadd.f32 %v598, %v798
        %s801 = scalar_lea.vmem %s2, 3
        %v802 = vld [vmem:[%s801] ss:$8 sm:$0x3]
        %v803 = vstv %s228
        %v804 = vmul.f32 %v803, %v404
        %v805 = vstv %s235
        %v806 = vmul.f32 %v805, %v404
        %808 = vrot.lane.b32.xlu0 %v806, 112
        %v809 = vpop.permute.xlu0 %808
        %v810 = vrot.slane %v809, 1
        %v811 = vsel %vm411, %v809, %v810
        %v813 = vadd.f32 %v804, %v811
        %v814 = vstv %s242
        %v815 = vmul.f32 %v814, %v404
        %817 = vrot.lane.b32.xlu0 %v815, 96
        %v818 = vpop.permute.xlu0 %817
        %v819 = vrot.slane %v818, 1
        %v820 = vsel %vm421, %v818, %v819
        %v822 = vadd.f32 %v813, %v820
        %v823 = vstv %s249
        %v824 = vmul.f32 %v823, %v404
        %826 = vrot.lane.b32.xlu0 %v824, 80
        %v827 = vpop.permute.xlu0 %826
        %v828 = vrot.slane %v827, 1
        %v829 = vsel %vm431, %v827, %v828
        %v831 = vadd.f32 %v822, %v829
        %v832 = vstv %s256
        %v833 = vmul.f32 %v832, %v404
        %835 = vrot.lane.b32.xlu0 %v833, 64
        %v836 = vpop.permute.xlu0 %835
        %v837 = vrot.slane %v836, 1
        %v838 = vsel %vm441, %v836, %v837
        %v840 = vadd.f32 %v831, %v838
        %v841 = vstv %s263
        %v842 = vmul.f32 %v841, %v404
        %844 = vrot.lane.b32.xlu0 %v842, 48
        %v845 = vpop.permute.xlu0 %844
        %v846 = vrot.slane %v845, 1
        %v847 = vsel %vm451, %v845, %v846
        %v849 = vadd.f32 %v840, %v847
        %v850 = vstv %s270
        %v851 = vmul.f32 %v850, %v404
        %853 = vrot.lane.b32.xlu0 %v851, 32
        %v854 = vpop.permute.xlu0 %853
        %v855 = vrot.slane %v854, 1
        %v856 = vsel %vm461, %v854, %v855
        %v858 = vadd.f32 %v849, %v856
        %860 = vrot.lane.b32.xlu0 %v802, 3
        %v861 = vpop.permute.xlu0 %860
        %v862 = vrot.slane %v861, 7
        %vm863 = vcmask 23552
        %v864 = vsel %vm863, %v862, %v861
        %v866 = vmul.f32 %v858, %v864
        %868 = vrot.lane.b32.xlu0 %v866, 125
        %v869 = vpop.permute.xlu0 %868
        %v870 = vrot.slane %v869, 1
        %vm871 = vcmask 1022976
        %v872 = vsel %vm871, %v869, %v870
        %v874 = vadd.f32 %v800, %v872
        %v875 = vstv %s277
        %v876 = vmul.f32 %v875, %v469
        %v877 = vstv %s284
        %v878 = vmul.f32 %v877, %v469
        %880 = vrot.lane.b32.xlu0 %v878, 112
        %v881 = vpop.permute.xlu0 %880
        %v882 = vrot.slane %v881, 1
        %v883 = vsel %vm411, %v881, %v882
        %v885 = vadd.f32 %v876, %v883
        %v886 = vstv %s291
        %v887 = vmul.f32 %v886, %v469
        %889 = vrot.lane.b32.xlu0 %v887, 96
        %v890 = vpop.permute.xlu0 %889
        %v891 = vrot.slane %v890, 1
        %v892 = vsel %vm421, %v890, %v891
        %v894 = vadd.f32 %v885, %v892
        %v895 = vstv %s298
        %v896 = vmul.f32 %v895, %v469
        %898 = vrot.lane.b32.xlu0 %v896, 80
        %v899 = vpop.permute.xlu0 %898
        %v900 = vrot.slane %v899, 1
        %v901 = vsel %vm431, %v899, %v900
        %v903 = vadd.f32 %v894, %v901
        %v904 = vstv %s305
        %v905 = vmul.f32 %v904, %v469
        %907 = vrot.lane.b32.xlu0 %v905, 64
        %v908 = vpop.permute.xlu0 %907
        %v909 = vrot.slane %v908, 1
        %v910 = vsel %vm441, %v908, %v909
        %v912 = vadd.f32 %v903, %v910
        %v913 = vstv %s312
        %v914 = vmul.f32 %v913, %v469
        %916 = vrot.lane.b32.xlu0 %v914, 48
        %v917 = vpop.permute.xlu0 %916
        %v918 = vrot.slane %v917, 1
        %v919 = vsel %vm451, %v917, %v918
        %v921 = vadd.f32 %v912, %v919
        %v922 = vstv %s319
        %v923 = vmul.f32 %v922, %v469
        %925 = vrot.lane.b32.xlu0 %v923, 32
        %v926 = vpop.permute.xlu0 %925
        %v927 = vrot.slane %v926, 1
        %v928 = vsel %vm461, %v926, %v927
        %v930 = vadd.f32 %v921, %v928
        %v931 = vmul.f32 %v930, %v864
        %933 = vrot.lane.b32.xlu0 %v931, 125
        %v934 = vpop.permute.xlu0 %933
        %v935 = vrot.slane %v934, 1
        %v936 = vsel %vm871, %v934, %v935
        %v938 = vadd.f32 %v736, %v936
        %s939 = scalar_lea.vmem %s2, 4
        %v940 = vld [vmem:[%s939] ss:$8 sm:$0x3]
        %v941 = vstv %s229
        %v942 = vmul.f32 %v941, %v404
        %v943 = vstv %s236
        %v944 = vmul.f32 %v943, %v404
        %946 = vrot.lane.b32.xlu0 %v944, 112
        %v947 = vpop.permute.xlu0 %946
        %v948 = vrot.slane %v947, 1
        %v949 = vsel %vm411, %v947, %v948
        %v951 = vadd.f32 %v942, %v949
        %v952 = vstv %s243
        %v953 = vmul.f32 %v952, %v404
        %955 = vrot.lane.b32.xlu0 %v953, 96
        %v956 = vpop.permute.xlu0 %955
        %v957 = vrot.slane %v956, 1
        %v958 = vsel %vm421, %v956, %v957
        %v960 = vadd.f32 %v951, %v958
        %v961 = vstv %s250
        %v962 = vmul.f32 %v961, %v404
        %964 = vrot.lane.b32.xlu0 %v962, 80
        %v965 = vpop.permute.xlu0 %964
        %v966 = vrot.slane %v965, 1
        %v967 = vsel %vm431, %v965, %v966
        %v969 = vadd.f32 %v960, %v967
        %v970 = vstv %s257
        %v971 = vmul.f32 %v970, %v404
        %973 = vrot.lane.b32.xlu0 %v971, 64
        %v974 = vpop.permute.xlu0 %973
        %v975 = vrot.slane %v974, 1
        %v976 = vsel %vm441, %v974, %v975
        %v978 = vadd.f32 %v969, %v976
        %v979 = vstv %s264
        %v980 = vmul.f32 %v979, %v404
        %982 = vrot.lane.b32.xlu0 %v980, 48
        %v983 = vpop.permute.xlu0 %982
        %v984 = vrot.slane %v983, 1
        %v985 = vsel %vm451, %v983, %v984
        %v987 = vadd.f32 %v978, %v985
        %v988 = vstv %s271
        %v989 = vmul.f32 %v988, %v404
        %991 = vrot.lane.b32.xlu0 %v989, 32
        %v992 = vpop.permute.xlu0 %991
        %v993 = vrot.slane %v992, 1
        %v994 = vsel %vm461, %v992, %v993
        %v996 = vadd.f32 %v987, %v994
        %998 = vrot.lane.b32.xlu0 %v940, 4
        %v999 = vpop.permute.xlu0 %998
        %v1000 = vrot.slane %v999, 7
        %vm1001 = vcmask 31744
        %v1002 = vsel %vm1001, %v1000, %v999
        %v1004 = vmul.f32 %v996, %v1002
        %1006 = vrot.lane.b32.xlu0 %v1004, 124
        %v1007 = vpop.permute.xlu0 %1006
        %v1008 = vrot.slane %v1007, 1
        %vm1009 = vcmask 1014784
        %v1010 = vsel %vm1009, %v1007, %v1008
        %v1012 = vadd.f32 %v938, %v1010
        %v1013 = vstv %s278
        %v1014 = vmul.f32 %v1013, %v469
        %v1015 = vstv %s285
        %v1016 = vmul.f32 %v1015, %v469
        %1018 = vrot.lane.b32.xlu0 %v1016, 112
        %v1019 = vpop.permute.xlu0 %1018
        %v1020 = vrot.slane %v1019, 1
        %v1021 = vsel %vm411, %v1019, %v1020
        %v1023 = vadd.f32 %v1014, %v1021
        %v1024 = vstv %s292
        %v1025 = vmul.f32 %v1024, %v469
        %1027 = vrot.lane.b32.xlu0 %v1025, 96
        %v1028 = vpop.permute.xlu0 %1027
        %v1029 = vrot.slane %v1028, 1
        %v1030 = vsel %vm421, %v1028, %v1029
        %v1032 = vadd.f32 %v1023, %v1030
        %v1033 = vstv %s299
        %v1034 = vmul.f32 %v1033, %v469
        %1036 = vrot.lane.b32.xlu0 %v1034, 80
        %v1037 = vpop.permute.xlu0 %1036
        %v1038 = vrot.slane %v1037, 1
        %v1039 = vsel %vm431, %v1037, %v1038
        %v1041 = vadd.f32 %v1032, %v1039
        %v1042 = vstv %s306
        %v1043 = vmul.f32 %v1042, %v469
        %1045 = vrot.lane.b32.xlu0 %v1043, 64
        %v1046 = vpop.permute.xlu0 %1045
        %v1047 = vrot.slane %v1046, 1
        %v1048 = vsel %vm441, %v1046, %v1047
        %v1050 = vadd.f32 %v1041, %v1048
        %v1051 = vstv %s313
        %v1052 = vmul.f32 %v1051, %v469
        %1054 = vrot.lane.b32.xlu0 %v1052, 48
        %v1055 = vpop.permute.xlu0 %1054
        %v1056 = vrot.slane %v1055, 1
        %v1057 = vsel %vm451, %v1055, %v1056
        %v1059 = vadd.f32 %v1050, %v1057
        %v1060 = vstv %s320
        %v1061 = vmul.f32 %v1060, %v469
        %1063 = vrot.lane.b32.xlu0 %v1061, 32
        %v1064 = vpop.permute.xlu0 %1063
        %v1065 = vrot.slane %v1064, 1
        %v1066 = vsel %vm461, %v1064, %v1065
        %v1068 = vadd.f32 %v1059, %v1066
        %v1069 = vmul.f32 %v1068, %v1002
        %1071 = vrot.lane.b32.xlu0 %v1069, 124
        %v1072 = vpop.permute.xlu0 %1071
        %v1073 = vrot.slane %v1072, 1
        %v1074 = vsel %vm1009, %v1072, %v1073
        %v1076 = vadd.f32 %v874, %v1074
        %s1077 = scalar_lea.vmem %s2, 5
        %v1078 = vld [vmem:[%s1077] ss:$8 sm:$0x3]
        %v1079 = vstv %s230
        %v1080 = vmul.f32 %v1079, %v404
        %v1081 = vstv %s237
        %v1082 = vmul.f32 %v1081, %v404
        %1084 = vrot.lane.b32.xlu0 %v1082, 112
        %v1085 = vpop.permute.xlu0 %1084
        %v1086 = vrot.slane %v1085, 1
        %v1087 = vsel %vm411, %v1085, %v1086
        %v1089 = vadd.f32 %v1080, %v1087
        %v1090 = vstv %s244
        %v1091 = vmul.f32 %v1090, %v404
        %1093 = vrot.lane.b32.xlu0 %v1091, 96
        %v1094 = vpop.permute.xlu0 %1093
        %v1095 = vrot.slane %v1094, 1
        %v1096 = vsel %vm421, %v1094, %v1095
        %v1098 = vadd.f32 %v1089, %v1096
        %v1099 = vstv %s251
        %v1100 = vmul.f32 %v1099, %v404
        %1102 = vrot.lane.b32.xlu0 %v1100, 80
        %v1103 = vpop.permute.xlu0 %1102
        %v1104 = vrot.slane %v1103, 1
        %v1105 = vsel %vm431, %v1103, %v1104
        %v1107 = vadd.f32 %v1098, %v1105
        %v1108 = vstv %s258
        %v1109 = vmul.f32 %v1108, %v404
        %1111 = vrot.lane.b32.xlu0 %v1109, 64
        %v1112 = vpop.permute.xlu0 %1111
        %v1113 = vrot.slane %v1112, 1
        %v1114 = vsel %vm441, %v1112, %v1113
        %v1116 = vadd.f32 %v1107, %v1114
        %v1117 = vstv %s265
        %v1118 = vmul.f32 %v1117, %v404
        %1120 = vrot.lane.b32.xlu0 %v1118, 48
        %v1121 = vpop.permute.xlu0 %1120
        %v1122 = vrot.slane %v1121, 1
        %v1123 = vsel %vm451, %v1121, %v1122
        %v1125 = vadd.f32 %v1116, %v1123
        %v1126 = vstv %s272
        %v1127 = vmul.f32 %v1126, %v404
        %1129 = vrot.lane.b32.xlu0 %v1127, 32
        %v1130 = vpop.permute.xlu0 %1129
        %v1131 = vrot.slane %v1130, 1
        %v1132 = vsel %vm461, %v1130, %v1131
        %v1134 = vadd.f32 %v1125, %v1132
        %1136 = vrot.lane.b32.xlu0 %v1078, 5
        %v1137 = vpop.permute.xlu0 %1136
        %v1138 = vrot.slane %v1137, 7
        %vm1139 = vcmask 39936
        %v1140 = vsel %vm1139, %v1138, %v1137
        %v1142 = vmul.f32 %v1134, %v1140
        %1144 = vrot.lane.b32.xlu0 %v1142, 123
        %v1145 = vpop.permute.xlu0 %1144
        %v1146 = vrot.slane %v1145, 1
        %vm1147 = vcmask 1006592
        %v1148 = vsel %vm1147, %v1145, %v1146
        %v1150 = vadd.f32 %v1076, %v1148
        %v1151 = vstv %s279
        %v1152 = vmul.f32 %v1151, %v469
        %v1153 = vstv %s286
        %v1154 = vmul.f32 %v1153, %v469
        %1156 = vrot.lane.b32.xlu0 %v1154, 112
        %v1157 = vpop.permute.xlu0 %1156
        %v1158 = vrot.slane %v1157, 1
        %v1159 = vsel %vm411, %v1157, %v1158
        %v1161 = vadd.f32 %v1152, %v1159
        %v1162 = vstv %s293
        %v1163 = vmul.f32 %v1162, %v469
        %1165 = vrot.lane.b32.xlu0 %v1163, 96
        %v1166 = vpop.permute.xlu0 %1165
        %v1167 = vrot.slane %v1166, 1
        %v1168 = vsel %vm421, %v1166, %v1167
        %v1170 = vadd.f32 %v1161, %v1168
        %v1171 = vstv %s300
        %v1172 = vmul.f32 %v1171, %v469
        %1174 = vrot.lane.b32.xlu0 %v1172, 80
        %v1175 = vpop.permute.xlu0 %1174
        %v1176 = vrot.slane %v1175, 1
        %v1177 = vsel %vm431, %v1175, %v1176
        %v1179 = vadd.f32 %v1170, %v1177
        %v1180 = vstv %s307
        %v1181 = vmul.f32 %v1180, %v469
        %1183 = vrot.lane.b32.xlu0 %v1181, 64
        %v1184 = vpop.permute.xlu0 %1183
        %v1185 = vrot.slane %v1184, 1
        %v1186 = vsel %vm441, %v1184, %v1185
        %v1188 = vadd.f32 %v1179, %v1186
        %v1189 = vstv %s314
        %v1190 = vmul.f32 %v1189, %v469
        %1192 = vrot.lane.b32.xlu0 %v1190, 48
        %v1193 = vpop.permute.xlu0 %1192
        %v1194 = vrot.slane %v1193, 1
        %v1195 = vsel %vm451, %v1193, %v1194
        %v1197 = vadd.f32 %v1188, %v1195
        %v1198 = vstv %s321
        %v1199 = vmul.f32 %v1198, %v469
        %1201 = vrot.lane.b32.xlu0 %v1199, 32
        %v1202 = vpop.permute.xlu0 %1201
        %v1203 = vrot.slane %v1202, 1
        %v1204 = vsel %vm461, %v1202, %v1203
        %v1206 = vadd.f32 %v1197, %v1204
        %v1207 = vmul.f32 %v1206, %v1140
        %1209 = vrot.lane.b32.xlu0 %v1207, 123
        %v1210 = vpop.permute.xlu0 %1209
        %v1211 = vrot.slane %v1210, 1
        %v1212 = vsel %vm1147, %v1210, %v1211
        %v1214 = vadd.f32 %v1012, %v1212
        %s1215 = scalar_lea.vmem %s2, 6
        %v1216 = vld [vmem:[%s1215] ss:$8 sm:$0x3]
        %v1217 = vstv %s231
        %v1218 = vmul.f32 %v1217, %v404
        %v1219 = vstv %s238
        %v1220 = vmul.f32 %v1219, %v404
        %1222 = vrot.lane.b32.xlu0 %v1220, 112
        %v1223 = vpop.permute.xlu0 %1222
        %v1224 = vrot.slane %v1223, 1
        %v1225 = vsel %vm411, %v1223, %v1224
        %v1227 = vadd.f32 %v1218, %v1225
        %v1228 = vstv %s245
        %v1229 = vmul.f32 %v1228, %v404
        %1231 = vrot.lane.b32.xlu0 %v1229, 96
        %v1232 = vpop.permute.xlu0 %1231
        %v1233 = vrot.slane %v1232, 1
        %v1234 = vsel %vm421, %v1232, %v1233
        %v1236 = vadd.f32 %v1227, %v1234
        %v1237 = vstv %s252
        %v1238 = vmul.f32 %v1237, %v404
        %1240 = vrot.lane.b32.xlu0 %v1238, 80
        %v1241 = vpop.permute.xlu0 %1240
        %v1242 = vrot.slane %v1241, 1
        %v1243 = vsel %vm431, %v1241, %v1242
        %v1245 = vadd.f32 %v1236, %v1243
        %v1246 = vstv %s259
        %v1247 = vmul.f32 %v1246, %v404
        %1249 = vrot.lane.b32.xlu0 %v1247, 64
        %v1250 = vpop.permute.xlu0 %1249
        %v1251 = vrot.slane %v1250, 1
        %v1252 = vsel %vm441, %v1250, %v1251
        %v1254 = vadd.f32 %v1245, %v1252
        %v1255 = vstv %s266
        %v1256 = vmul.f32 %v1255, %v404
        %1258 = vrot.lane.b32.xlu0 %v1256, 48
        %v1259 = vpop.permute.xlu0 %1258
        %v1260 = vrot.slane %v1259, 1
        %v1261 = vsel %vm451, %v1259, %v1260
        %v1263 = vadd.f32 %v1254, %v1261
        %v1264 = vstv %s273
        %v1265 = vmul.f32 %v1264, %v404
        %1267 = vrot.lane.b32.xlu0 %v1265, 32
        %v1268 = vpop.permute.xlu0 %1267
        %v1269 = vrot.slane %v1268, 1
        %v1270 = vsel %vm461, %v1268, %v1269
        %v1272 = vadd.f32 %v1263, %v1270
        %1274 = vrot.lane.b32.xlu0 %v1216, 6
        %v1275 = vpop.permute.xlu0 %1274
        %v1276 = vrot.slane %v1275, 7
        %vm1277 = vcmask 48128
        %v1278 = vsel %vm1277, %v1276, %v1275
        %v1280 = vmul.f32 %v1272, %v1278
        %1282 = vrot.lane.b32.xlu0 %v1280, 122
        %v1283 = vpop.permute.xlu0 %1282
        %v1284 = vrot.slane %v1283, 1
        %vm1285 = vcmask 998400
        %v1286 = vsel %vm1285, %v1283, %v1284
        %v1288 = vadd.f32 %v1214, %v1286
        %v1289 = vstv %s280
        %v1290 = vmul.f32 %v1289, %v469
        %v1291 = vstv %s287
        %v1292 = vmul.f32 %v1291, %v469
        %1294 = vrot.lane.b32.xlu0 %v1292, 112
        %v1295 = vpop.permute.xlu0 %1294
        %v1296 = vrot.slane %v1295, 1
        %v1297 = vsel %vm411, %v1295, %v1296
        %v1299 = vadd.f32 %v1290, %v1297
        %v1300 = vstv %s294
        %v1301 = vmul.f32 %v1300, %v469
        %1303 = vrot.lane.b32.xlu0 %v1301, 96
        %v1304 = vpop.permute.xlu0 %1303
        %v1305 = vrot.slane %v1304, 1
        %v1306 = vsel %vm421, %v1304, %v1305
        %v1308 = vadd.f32 %v1299, %v1306
        %v1309 = vstv %s301
        %v1310 = vmul.f32 %v1309, %v469
        %1312 = vrot.lane.b32.xlu0 %v1310, 80
        %v1313 = vpop.permute.xlu0 %1312
        %v1314 = vrot.slane %v1313, 1
        %v1315 = vsel %vm431, %v1313, %v1314
        %v1317 = vadd.f32 %v1308, %v1315
        %v1318 = vstv %s308
        %v1319 = vmul.f32 %v1318, %v469
        %1321 = vrot.lane.b32.xlu0 %v1319, 64
        %v1322 = vpop.permute.xlu0 %1321
        %v1323 = vrot.slane %v1322, 1
        %v1324 = vsel %vm441, %v1322, %v1323
        %v1326 = vadd.f32 %v1317, %v1324
        %v1327 = vstv %s315
        %v1328 = vmul.f32 %v1327, %v469
        %1330 = vrot.lane.b32.xlu0 %v1328, 48
        %v1331 = vpop.permute.xlu0 %1330
        %v1332 = vrot.slane %v1331, 1
        %v1333 = vsel %vm451, %v1331, %v1332
        %v1335 = vadd.f32 %v1326, %v1333
        %v1336 = vstv %s322
        %v1337 = vmul.f32 %v1336, %v469
        %1339 = vrot.lane.b32.xlu0 %v1337, 32
        %v1340 = vpop.permute.xlu0 %1339
        %v1341 = vrot.slane %v1340, 1
        %v1342 = vsel %vm461, %v1340, %v1341
        %v1344 = vadd.f32 %v1335, %v1342
        %v1345 = vmul.f32 %v1344, %v1278
        %1347 = vrot.lane.b32.xlu0 %v1345, 122
        %v1348 = vpop.permute.xlu0 %1347
        %v1349 = vrot.slane %v1348, 1
        %v1350 = vsel %vm1285, %v1348, %v1349
        %v1352 = vadd.f32 %v1150, %v1350
        %v1353 = vadd.f32 %v1288, %v1352
        %v1354 = vstv %s323
        %v1355 = vmul.f32 %v1353, %v1354
        %v1356 = vstv %s324
        %v1357 = vadd.f32 %v1355, %v1356
        %v1358 = vsub.f32 0.0, %v1357
        %v1359 = vmul.f32 %v1358, 1.442695
        %v1360 = vpow.pop %v1359
        %v1361 = vadd.f32 %v1360, 1.0
        %v1362 = vrcp.pop %v1361
        %v1363 = vmul.f32 %v1361, %v1362
        %v1364 = vsub.f32 1.0, %v1363
        %v1365 = vmul.f32 %v1362, %v1364
        %v1366 = vadd.f32 %v1362, %v1365
        %vm1367 = vweird.f32 %v1361
        %vm1368 = vweird.f32 %v1362
        %vm1369 = vmor %vm1367, %vm1368
        %v1370 = vsel %vm1369, %v1362, %v1366
        %v1371 = vand.u32 2147483647, %v1361
        %vm1372 = vcmp.eq.f32.partialorder %v1371, 8.507059e+37
        %v1373 = vand.u32 %v1361, 2147483648
        %v1374 = vor.u32 1.1754944e-38, %v1373
        %v1375 = vsel %vm1372, %v1374, %v1370
        %v1376 = vmul.f32 1.0, %v1375
        %v1377 = vld [vmem:[%s219] sm:$0xff]
        %v1379 = vperm.slane %v1376, 0
        %v1380 = vperm.slane %v1376, 1
        %v1381 = vrot.slane %v1380, 4
        %v1382 = vsel %vm338, %v1379, %v1381
        %v1384 = vmul.f32 %v1377, %v1382
        %1385 = vst [vmem:[%s224] sm:$0xff] %v1384
        %p1386 = scmp.lt.s32.totalorder %s17, 1
        %s1387 = scalar_select %p1386, %s17, 1
        %s1388 = smul.addr %s1387, 2
        %s1389 = smul.addr %s1388, 4
        %s1390 = scalar_lea.vmem %s4, %s1389
        // Predicated region
        $region45: #{spatial_gate_forward.1} parent=35 // pred_check
          %p1391 = pneg %p124
        $region46: #{spatial_gate_forward.1} parent=35 // pred_check_branch
          %1393 = sbr.rel (%p1391) target = $region48
        $region47: #{spatial_gate_forward.1} parent=35 // pred_region
          _
        $region48: #{spatial_gate_forward.1} parent=35 // pred_fallthru
          _
      $region36: #{spatial_gate_forward.1} parent=5 // pred_fallthru
        _
      %p1394 = scmp.le.s32.totalorder 2, %s12
      // Predicated region
      $region49: #{spatial_gate_forward.1} parent=5 // pred_check
        %p1395 = pneg %p1394
      $region50: #{spatial_gate_forward.1} parent=5 // pred_check_branch
        %1397 = sbr.rel (%p1395) target = $region52
      $region51: #{spatial_gate_forward.1} parent=5 // pred_region
        %s1398 = ssub.s32 %s12, 2
        // Predicated region
        $region53: #{spatial_gate_forward.1} parent=51 // pred_check
          %p1399 = pneg %p130
        $region54: #{spatial_gate_forward.1} parent=51 // pred_check_branch
          %1401 = sbr.rel (%p1399) target = $region56
        $region55: #{spatial_gate_forward.1} parent=51 // pred_region
          %p1402 = scmp.lt.s32.totalorder %s18, 1
          %s1403 = scalar_select %p1402, %s18, 1
          %s1404 = smul.addr %s1403, 2
          %s1405 = smul.addr %s1404, 4
          %s1406 = scalar_lea.vmem %s4, %s1405
        $region56: #{spatial_gate_forward.1} parent=51 // pred_fallthru
          _
      $region52: #{spatial_gate_forward.1} parent=5 // pred_fallthru
        _
    $region6: #{spatial_gate_forward.1} parent=1 // loop_footer
      %s16 = sadd.s32 1, %s12
    $region7: #{spatial_gate_forward.1} parent=1 // loop_footer_branch
      %11 = sbr.rel target = $region3
    $region8: #{spatial_gate_forward.1} parent=1 // loop_exit
      _
    %1407 = vsyncpa [#allocation4], 1
    %s1408 = scalar_lea.sflag [#allocation4], 1
    %1409 = vsyncpa %s1408, 1
    %1410 = vsyncpa [#allocation6], 1

</llo_original>
